<compile_context>
chip_gen: v5e
topology: v5e:2x2
jax: 0.10.0
libtpu: 0.0.40
codegen_flags: <defaults>
</compile_context>

<pallas_src>
import jax
import jax.numpy as jnp
import numpy as np
from jax.experimental import pallas as pl
from jax.experimental.pallas import tpu as pltpu

_EPS = 1e-5


# ---------------------------------------------------------------------------
# Kernel 1: conv1/conv2/conv3 + global max pool over points (tiled over N)
# ---------------------------------------------------------------------------
def _stn3d_conv_kernel(x_ref, w1_ref, t1_ref, w2_ref, t2_ref, w3_ref, t3_ref,
                       o_ref):
    n = pl.program_id(1)

    x = x_ref[0]                                   # (3, TN) f32, NCL tile
    w1 = w1_ref[...]                               # (64, 3) f32, BN scale folded

    # conv1 (1x1, K=3) on the VPU as 3 broadcast FMAs -> (64, TN)
    z1 = (w1[:, 0:1] * x[0:1, :]
          + w1[:, 1:2] * x[1:2, :]
          + w1[:, 2:3] * x[2:3, :])
    z1 = jnp.maximum(z1 + t1_ref[...], 0.0)        # bn1 shift + relu, t1 is (64,1)

    # move to points-on-sublanes / channels-on-lanes for the MXU stack
    h = z1.T.astype(jnp.bfloat16)                  # (TN, 64)

    # conv2 + bn2 + relu -> (TN, 128)
    h = jnp.dot(h, w2_ref[...], preferred_element_type=jnp.float32)
    h = jnp.maximum(h + t2_ref[...], 0.0).astype(jnp.bfloat16)

    # conv3 + bn3 + relu -> (TN, 1024)
    h = jnp.dot(h, w3_ref[...], preferred_element_type=jnp.float32)
    h = jnp.maximum(h + t3_ref[...], 0.0)

    # running max over point tiles; o_ref block (1, 1, 1024) is resident across n
    tile_max = jnp.max(h, axis=0, keepdims=True)   # (1, 1024) f32

    @pl.when(n == 0)
    def _():
        o_ref[0] = tile_max

    @pl.when(n > 0)
    def _():
        o_ref[0] = jnp.maximum(o_ref[0], tile_max)


# ---------------------------------------------------------------------------
# Kernel 2: fc1/fc2/fc3 tail, whole batch in one block (M = B)
# ---------------------------------------------------------------------------
def _stn3d_fc_kernel(feat_ref, w4_ref, t4_ref, w5_ref, t5_ref, w6_ref, b6_ref,
                     o_ref):
    f = feat_ref[...].astype(jnp.bfloat16)                     # (B, 1024)

    f = jnp.dot(f, w4_ref[...], preferred_element_type=jnp.float32)
    f = jnp.maximum(f + t4_ref[...], 0.0).astype(jnp.bfloat16)  # (B, 512)

    f = jnp.dot(f, w5_ref[...], preferred_element_type=jnp.float32)
    f = jnp.maximum(f + t5_ref[...], 0.0).astype(jnp.bfloat16)  # (B, 256)

    # fc3 (bias + identity folded, padded to 128 lanes -> unmasked stores)
    o_ref[...] = (jnp.dot(f, w6_ref[...], preferred_element_type=jnp.float32)
                  + b6_ref[...])                                 # (B, 128)


# ---------------------------------------------------------------------------
# Wrapper
# ---------------------------------------------------------------------------
def stn3d_forward(x_ncl, prep, tn=None):
    """x_ncl: (B, 3, N) float32 (PyTorch layout). Returns (B, 3, 3)."""
    B, C, N = x_ncl.shape
    assert C == 3
    (w1, t1, w2, t2, w3, t3, w4, t4, w5, t5, w6p, b6p) = prep

    if tn is None:
        tn = N if N <= 512 else 512
    assert N % tn == 0, "TODO(synk): ragged point tiles are not masked yet"
    assert tn == N or tn % 128 == 0
    n_tiles = N // tn

    conv_params = (w1, t1, w2, t2, w3, t3)

    def const2(shape):  # constant-index 2D weight spec for grid=(B, n_tiles)
        return pl.BlockSpec(shape, lambda b, n: (0, 0))

    conv_cost = pl.CostEstimate(
        flops=2 * B * N * (3 * 64 + 64 * 128 + 128 * 1024),
        transcendentals=0,
        bytes_accessed=(x_ncl.size * x_ncl.dtype.itemsize
                        + sum(int(p.size) * p.dtype.itemsize for p in conv_params)
                        + B * 1024 * 4),
    )

    feat = pl.pallas_call(
        _stn3d_conv_kernel,
        out_shape=jax.ShapeDtypeStruct((B, 1, 1024), jnp.float32),
        grid_spec=pltpu.PrefetchScalarGridSpec(
            num_scalar_prefetch=0,
            grid=(B, n_tiles),
            in_specs=[
                pl.BlockSpec((1, 3, tn), lambda b, n: (b, 0, n)),  # x tile (NCL)
                const2(w1.shape), const2(t1.shape),
                const2(w2.shape), const2(t2.shape),
                const2(w3.shape), const2(t3.shape),
            ],
            out_specs=pl.BlockSpec((1, 1, 1024), lambda b, n: (b, 0, 0)),
        ),
        compiler_params=pltpu.CompilerParams(
            dimension_semantics=("parallel", "arbitrary"),
            vmem_limit_bytes=32 * 1024 * 1024,
        ),
        cost_estimate=conv_cost,
    )(x_ncl, *conv_params)

    feat = feat.reshape(B, 1024)

    fc_params = (w4, t4, w5, t5, w6p, b6p)

    def const1(shape):  # constant-index 2D spec for grid=(1,)
        return pl.BlockSpec(shape, lambda i: (0, 0))

    fc_cost = pl.CostEstimate(
        flops=2 * B * (1024 * 512 + 512 * 256 + 256 * 128),
        transcendentals=0,
        bytes_accessed=(B * 1024 * 4
                        + sum(int(p.size) * p.dtype.itemsize for p in fc_params)
                        + B * 128 * 4),
    )

    out_pad = pl.pallas_call(
        _stn3d_fc_kernel,
        out_shape=jax.ShapeDtypeStruct((B, 128), jnp.float32),
        grid_spec=pltpu.PrefetchScalarGridSpec(
            num_scalar_prefetch=0,
            grid=(1,),
            in_specs=[const1((B, 1024))] + [const1(p.shape) for p in fc_params],
            out_specs=pl.BlockSpec((B, 128), lambda i: (0, 0)),
        ),
        compiler_params=pltpu.CompilerParams(
            dimension_semantics=("arbitrary",),
            vmem_limit_bytes=32 * 1024 * 1024,
        ),
        cost_estimate=fc_cost,
    )(feat, *fc_params)

    return out_pad[:, :9].reshape(B, 3, 3)


# ---------------------------------------------------------------------------
# Parameter construction (synthetic, PyTorch shapes) and BN folding
# ---------------------------------------------------------------------------
def make_raw_params(key):
    """Deterministic synthetic params in PyTorch STN3d layout (eval-mode BN)."""
    dims = [(3, 64), (64, 128), (128, 1024), (1024, 512), (512, 256), (256, 9)]
    keys = jax.random.split(key, 6 * len(dims))
    raw = []
    ki = 0
    for li, (cin, cout) in enumerate(dims):
        w = 0.1 * jax.random.normal(keys[ki], (cout, cin), jnp.float32); ki += 1
        b = 0.1 * jax.random.normal(keys[ki], (cout,), jnp.float32); ki += 1
        if li < 5:  # layers followed by BatchNorm1d
            gamma = 1.0 + 0.1 * jax.random.normal(keys[ki], (cout,), jnp.float32); ki += 1
            beta = 0.1 * jax.random.normal(keys[ki], (cout,), jnp.float32); ki += 1
            mean = 0.05 * jax.random.normal(keys[ki], (cout,), jnp.float32); ki += 1
            var = 1.0 + 0.1 * jax.random.uniform(keys[ki], (cout,), jnp.float32); ki += 1
            raw.append((w, b, gamma, beta, mean, var))
        else:       # fc3: bias only
            ki += 4
            raw.append((w, b))
    return raw


def prepare_params(raw):
    """Fold eval-mode BN scale into weights (shift kept separate), transpose to
    x @ W form, cast MXU weights to bf16, fold identity into fc3 bias, and pad
    fc3 to a lane-dense 128-wide output."""
    def fold(w, b, g, beta, mu, var):
        s = g / jnp.sqrt(var + _EPS)          # (cout,)
        ws = w * s[:, None]                   # scale folded into the weight
        t = (b - mu) * s + beta               # per-channel shift
        return ws, t

    c1, c2, c3, f1, f2, f3 = raw
    w1, t1 = fold(*c1)                        # (64, 3), (64,)
    w2, t2 = fold(*c2)                        # (128, 64), (128,)
    w3, t3 = fold(*c3)                        # (1024, 128), (1024,)
    w4, t4 = fold(*f1)                        # (512, 1024), (512,)
    w5, t5 = fold(*f2)                        # (256, 512), (256,)
    w6, b6 = f3                               # (9, 256), (9,)

    iden = jnp.eye(3, dtype=jnp.float32).reshape(9)
    w6p = jnp.zeros((256, 128), jnp.float32).at[:, :9].set(w6.T)
    b6p = jnp.zeros((128,), jnp.float32).at[:9].set(b6 + iden)

    return (
        w1.astype(jnp.float32), t1.reshape(64, 1),          # conv1 stays f32 (VPU)
        w2.T.astype(jnp.bfloat16), t2.reshape(1, -1).astype(jnp.float32),
        w3.T.astype(jnp.bfloat16), t3.reshape(1, -1).astype(jnp.float32),
        w4.T.astype(jnp.bfloat16), t4.reshape(1, -1).astype(jnp.float32),
        w5.T.astype(jnp.bfloat16), t5.reshape(1, -1).astype(jnp.float32),
        w6p.astype(jnp.bfloat16), b6p.reshape(1, -1),
    )


# ---------------------------------------------------------------------------
# Pure-JAX reference on the same prepared (BN-folded, bf16) parameters
# ---------------------------------------------------------------------------
def stn3d_reference(x_ncl, prep):
    (w1, t1, w2, t2, w3, t3, w4, t4, w5, t5, w6p, b6p) = prep
    B = x_ncl.shape[0]
    x = jnp.transpose(x_ncl, (0, 2, 1)).astype(jnp.float32)          # (B, N, 3)

    h = jnp.einsum("bnc,kc->bnk", x, w1) + t1[:, 0][None, None, :]   # conv1+bn1
    h = jnp.maximum(h, 0.0)
    h = jnp.einsum("bnk,km->bnm", h.astype(jnp.bfloat16), w2,
                   preferred_element_type=jnp.float32)
    h = jnp.maximum(h + t2, 0.0)
    h = jnp.einsum("bnk,km->bnm", h.astype(jnp.bfloat16), w3,
                   preferred_element_type=jnp.float32)
    h = jnp.maximum(h + t3, 0.0)
    feat = jnp.max(h, axis=1)                                        # (B, 1024)

    f = jnp.einsum("bk,km->bm", feat.astype(jnp.bfloat16), w4,
                   preferred_element_type=jnp.float32)
    f = jnp.maximum(f + t4, 0.0)
    f = jnp.einsum("bk,km->bm", f.astype(jnp.bfloat16), w5,
                   preferred_element_type=jnp.float32)
    f = jnp.maximum(f + t5, 0.0)
    out = jnp.einsum("bk,km->bm", f.astype(jnp.bfloat16), w6p,
                     preferred_element_type=jnp.float32) + b6p
    return out[:, :9].reshape(B, 3, 3)


if __name__ == "__main__":
    key = jax.random.PRNGKey(0)
    k_x, k_p = jax.random.split(key)

    B, N = 2, 256
    x = jax.random.normal(k_x, (B, 3, N), jnp.float32)   # PyTorch (B, C, L)
    prep = prepare_params(make_raw_params(k_p))

    out = stn3d_forward(x, prep, tn=128)                 # 2 point tiles per batch
    out = jax.block_until_ready(out)

    ref = stn3d_reference(x, prep)
    np.testing.assert_allclose(np.asarray(out), np.asarray(ref),
                               rtol=1e-2, atol=1e-2)
    assert out.shape == (B, 3, 3)
    print("KERNEL_OK")
</pallas_src>

<mosaic_0001>
module attributes {stable_mosaic.version = 11 : i64} {
  func.func @_stn3d_conv_kernel(%arg0: i32, %arg1: i32, %arg2: memref<1x3x128xf32, #tpu.memory_space<vmem>>, %arg3: memref<64x3xf32, #tpu.memory_space<vmem>>, %arg4: memref<64x1xf32, #tpu.memory_space<vmem>>, %arg5: memref<64x128xbf16, #tpu.memory_space<vmem>>, %arg6: memref<1x128xf32, #tpu.memory_space<vmem>>, %arg7: memref<128x1024xbf16, #tpu.memory_space<vmem>>, %arg8: memref<1x1024xf32, #tpu.memory_space<vmem>>, %arg9: memref<1x1x1024xf32, #tpu.memory_space<vmem>>) attributes {dimension_semantics = [#tpu.dimension_semantics<parallel>, #tpu.dimension_semantics<arbitrary>], iteration_bounds = array<i64: 2, 2>, scalar_prefetch = 0 : i64, scratch_operands = 0 : i64, tpu.core_type = #tpu.core_type<tc>, window_params = [{transform_indices = @transform_0, window_bounds = array<i64: 1, 3, 128>}, {pipeline_mode = #tpu.pipeline_mode<synchronous>, transform_indices = @transform_1, window_bounds = array<i64: 64, 3>}, {pipeline_mode = #tpu.pipeline_mode<synchronous>, transform_indices = @transform_2, window_bounds = array<i64: 64, 1>}, {pipeline_mode = #tpu.pipeline_mode<synchronous>, transform_indices = @transform_3, window_bounds = array<i64: 64, 128>}, {pipeline_mode = #tpu.pipeline_mode<synchronous>, transform_indices = @transform_4, window_bounds = array<i64: 1, 128>}, {pipeline_mode = #tpu.pipeline_mode<synchronous>, transform_indices = @transform_5, window_bounds = array<i64: 128, 1024>}, {pipeline_mode = #tpu.pipeline_mode<synchronous>, transform_indices = @transform_6, window_bounds = array<i64: 1, 1024>}, {transform_indices = @transform_7, window_bounds = array<i64: 1, 1, 1024>}]} {
    %c0 = arith.constant 0 : index
    %c0_0 = arith.constant 0 : index
    %c0_1 = arith.constant 0 : index
    %0 = vector.load %arg2[%c0, %c0_0, %c0_1] : memref<1x3x128xf32, #tpu.memory_space<vmem>>, vector<1x3x128xf32>
    %1 = vector.shape_cast %0 : vector<1x3x128xf32> to vector<3x128xf32>
    %c0_2 = arith.constant 0 : index
    %c0_3 = arith.constant 0 : index
    %2 = vector.load %arg3[%c0_2, %c0_3] : memref<64x3xf32, #tpu.memory_space<vmem>>, vector<64x3xf32>
    %3 = vector.extract_strided_slice %2 {offsets = [0, 0], sizes = [64, 1], strides = [1, 1]} : vector<64x3xf32> to vector<64x1xf32>
    %4 = vector.extract_strided_slice %1 {offsets = [0, 0], sizes = [1, 128], strides = [1, 1]} : vector<3x128xf32> to vector<1x128xf32>
    %5 = vector.broadcast %3 : vector<64x1xf32> to vector<64x128xf32>
    %6 = vector.broadcast %4 : vector<1x128xf32> to vector<64x128xf32>
    %7 = arith.mulf %5, %6 : vector<64x128xf32>
    %8 = vector.extract_strided_slice %2 {offsets = [0, 1], sizes = [64, 1], strides = [1, 1]} : vector<64x3xf32> to vector<64x1xf32>
    %9 = vector.extract_strided_slice %1 {offsets = [1, 0], sizes = [1, 128], strides = [1, 1]} : vector<3x128xf32> to vector<1x128xf32>
    %10 = vector.broadcast %8 : vector<64x1xf32> to vector<64x128xf32>
    %11 = vector.broadcast %9 : vector<1x128xf32> to vector<64x128xf32>
    %12 = arith.mulf %10, %11 : vector<64x128xf32>
    %13 = arith.addf %7, %12 : vector<64x128xf32>
    %14 = vector.extract_strided_slice %2 {offsets = [0, 2], sizes = [64, 1], strides = [1, 1]} : vector<64x3xf32> to vector<64x1xf32>
    %15 = vector.extract_strided_slice %1 {offsets = [2, 0], sizes = [1, 128], strides = [1, 1]} : vector<3x128xf32> to vector<1x128xf32>
    %16 = vector.broadcast %14 : vector<64x1xf32> to vector<64x128xf32>
    %17 = vector.broadcast %15 : vector<1x128xf32> to vector<64x128xf32>
    %18 = arith.mulf %16, %17 : vector<64x128xf32>
    %19 = arith.addf %13, %18 : vector<64x128xf32>
    %c0_4 = arith.constant 0 : index
    %c0_5 = arith.constant 0 : index
    %20 = vector.load %arg4[%c0_4, %c0_5] : memref<64x1xf32, #tpu.memory_space<vmem>>, vector<64x1xf32>
    %21 = vector.broadcast %20 : vector<64x1xf32> to vector<64x128xf32>
    %22 = arith.addf %19, %21 : vector<64x128xf32>
    %cst = arith.constant 0.000000e+00 : f32
    %23 = vector.broadcast %cst : f32 to vector<64x128xf32>
    %24 = arith.maximumf %22, %23 : vector<64x128xf32>
    %25 = tpu.transpose %24, [1, 0] : vector<64x128xf32> -> vector<128x64xf32>
    %26 = arith.truncf %25 : vector<128x64xf32> to vector<128x64xbf16>
    %c0_6 = arith.constant 0 : index
    %c0_7 = arith.constant 0 : index
    %27 = vector.load %arg5[%c0_6, %c0_7] : memref<64x128xbf16, #tpu.memory_space<vmem>>, vector<64x128xbf16>
    %cst_8 = arith.constant dense<0.000000e+00> : vector<128x128xf32>
    %28 = tpu.matmul %26, %27, %cst_8 {dimension_numbers = #tpu.dot_dimension_numbers<[1], [0], [0], [1], [0, 0, 1, 1], [], []>} : vector<128x64xbf16>, vector<64x128xbf16>, vector<128x128xf32> -> vector<128x128xf32>
    %c0_9 = arith.constant 0 : index
    %c0_10 = arith.constant 0 : index
    %29 = vector.load %arg6[%c0_9, %c0_10] : memref<1x128xf32, #tpu.memory_space<vmem>>, vector<1x128xf32>
    %30 = vector.broadcast %29 : vector<1x128xf32> to vector<128x128xf32>
    %31 = arith.addf %28, %30 : vector<128x128xf32>
    %cst_11 = arith.constant 0.000000e+00 : f32
    %32 = vector.broadcast %cst_11 : f32 to vector<128x128xf32>
    %33 = arith.maximumf %31, %32 : vector<128x128xf32>
    %34 = arith.truncf %33 : vector<128x128xf32> to vector<128x128xbf16>
    %c0_12 = arith.constant 0 : index
    %c0_13 = arith.constant 0 : index
    %35 = vector.load %arg7[%c0_12, %c0_13] : memref<128x1024xbf16, #tpu.memory_space<vmem>>, vector<128x1024xbf16>
    %cst_14 = arith.constant dense<0.000000e+00> : vector<128x1024xf32>
    %36 = tpu.matmul %34, %35, %cst_14 {dimension_numbers = #tpu.dot_dimension_numbers<[1], [0], [0], [1], [0, 0, 1, 1], [], []>} : vector<128x128xbf16>, vector<128x1024xbf16>, vector<128x1024xf32> -> vector<128x1024xf32>
    %c0_15 = arith.constant 0 : index
    %c0_16 = arith.constant 0 : index
    %37 = vector.load %arg8[%c0_15, %c0_16] : memref<1x1024xf32, #tpu.memory_space<vmem>>, vector<1x1024xf32>
    %38 = vector.broadcast %37 : vector<1x1024xf32> to vector<128x1024xf32>
    %39 = arith.addf %36, %38 : vector<128x1024xf32>
    %cst_17 = arith.constant 0.000000e+00 : f32
    %40 = vector.broadcast %cst_17 : f32 to vector<128x1024xf32>
    %41 = arith.maximumf %39, %40 : vector<128x1024xf32>
    %cst_18 = arith.constant dense<0xFF800000> : vector<1024xf32>
    %42 = vector.multi_reduction <maximumf>, %41, %cst_18 [0] : vector<128x1024xf32> to vector<1024xf32>
    %43 = vector.shape_cast %42 : vector<1024xf32> to vector<1x1024xf32>
    %c0_i32 = arith.constant 0 : i32
    %44 = arith.cmpi eq, %arg1, %c0_i32 : i32
    %45 = arith.extui %44 : i1 to i32
    %c0_i32_19 = arith.constant 0 : i32
    %46 = arith.cmpi ne, %45, %c0_i32_19 : i32
    scf.if %46 {
      %c0_22 = arith.constant 0 : index
      %c0_23 = arith.constant 0 : index
      %c0_24 = arith.constant 0 : index
      %50 = vector.load %arg9[%c0_22, %c0_23, %c0_24] : memref<1x1x1024xf32, #tpu.memory_space<vmem>>, vector<1x1x1024xf32>
      %51 = vector.shape_cast %50 : vector<1x1x1024xf32> to vector<1x1024xf32>
      %52 = vector.shape_cast %43 : vector<1x1024xf32> to vector<1x1x1024xf32>
      tpu.vector_store %arg9[%c0_22, %c0_23, %c0_24], %52 {strides = array<i32>} : memref<1x1x1024xf32, #tpu.memory_space<vmem>>, vector<1x1x1024xf32>,
    } else {
    }
    %c0_i32_20 = arith.constant 0 : i32
    %47 = arith.cmpi sgt, %arg1, %c0_i32_20 : i32
    %48 = arith.extui %47 : i1 to i32
    %c0_i32_21 = arith.constant 0 : i32
    %49 = arith.cmpi ne, %48, %c0_i32_21 : i32
    scf.if %49 {
      %c0_22 = arith.constant 0 : index
      %c0_23 = arith.constant 0 : index
      %c0_24 = arith.constant 0 : index
      %50 = vector.load %arg9[%c0_22, %c0_23, %c0_24] : memref<1x1x1024xf32, #tpu.memory_space<vmem>>, vector<1x1x1024xf32>
      %51 = vector.shape_cast %50 : vector<1x1x1024xf32> to vector<1x1024xf32>
      %52 = arith.maximumf %51, %43 : vector<1x1024xf32>
      %c0_25 = arith.constant 0 : index
      %c0_26 = arith.constant 0 : index
      %c0_27 = arith.constant 0 : index
      %53 = vector.load %arg9[%c0_25, %c0_26, %c0_27] : memref<1x1x1024xf32, #tpu.memory_space<vmem>>, vector<1x1x1024xf32>
      %54 = vector.shape_cast %53 : vector<1x1x1024xf32> to vector<1x1024xf32>
      %55 = vector.shape_cast %52 : vector<1x1024xf32> to vector<1x1x1024xf32>
      tpu.vector_store %arg9[%c0_25, %c0_26, %c0_27], %55 {strides = array<i32>} : memref<1x1x1024xf32, #tpu.memory_space<vmem>>, vector<1x1x1024xf32>,
    } else {
    }
    return
  }
  func.func @transform_0(%arg0: i32, %arg1: i32) -> (i32, i32, i32) {
    %c0_i32 = arith.constant 0 : i32
    %c0_i32_0 = arith.constant 0 : i32
    return %arg0, %c0_i32, %arg1 : i32, i32, i32
  }
  func.func @transform_1(%arg0: i32, %arg1: i32) -> (i32, i32) {
    %c0_i32 = arith.constant 0 : i32
    %c0_i32_0 = arith.constant 0 : i32
    %c0_i32_1 = arith.constant 0 : i32
    return %c0_i32, %c0_i32_0 : i32, i32
  }
  func.func @transform_2(%arg0: i32, %arg1: i32) -> (i32, i32) {
    %c0_i32 = arith.constant 0 : i32
    %c0_i32_0 = arith.constant 0 : i32
    %c0_i32_1 = arith.constant 0 : i32
    return %c0_i32, %c0_i32_0 : i32, i32
  }
  func.func @transform_3(%arg0: i32, %arg1: i32) -> (i32, i32) {
    %c0_i32 = arith.constant 0 : i32
    %c0_i32_0 = arith.constant 0 : i32
    %c0_i32_1 = arith.constant 0 : i32
    return %c0_i32, %c0_i32_0 : i32, i32
  }
  func.func @transform_4(%arg0: i32, %arg1: i32) -> (i32, i32) {
    %c0_i32 = arith.constant 0 : i32
    %c0_i32_0 = arith.constant 0 : i32
    %c0_i32_1 = arith.constant 0 : i32
    return %c0_i32, %c0_i32_0 : i32, i32
  }
  func.func @transform_5(%arg0: i32, %arg1: i32) -> (i32, i32) {
    %c0_i32 = arith.constant 0 : i32
    %c0_i32_0 = arith.constant 0 : i32
    %c0_i32_1 = arith.constant 0 : i32
    return %c0_i32, %c0_i32_0 : i32, i32
  }
  func.func @transform_6(%arg0: i32, %arg1: i32) -> (i32, i32) {
    %c0_i32 = arith.constant 0 : i32
    %c0_i32_0 = arith.constant 0 : i32
    %c0_i32_1 = arith.constant 0 : i32
    return %c0_i32, %c0_i32_0 : i32, i32
  }
  func.func @transform_7(%arg0: i32, %arg1: i32) -> (i32, i32, i32) {
    %c0_i32 = arith.constant 0 : i32
    %c0_i32_0 = arith.constant 0 : i32
    %c0_i32_1 = arith.constant 0 : i32
    return %arg0, %c0_i32, %c0_i32_0 : i32, i32, i32
  }
}

</mosaic_0001>

<llo_original>
// kernel: tpu_custom_call.1
$region0: #{tpu_custom_call.1}
  #allocation0 [shape = 'u32[]', space=smem, size = 0x4, offset = 0x4, fixed_abs, tag = 'smem constant byte address 0x4 - core index']
  #allocation1 [shape = 'u32[72,128]{1,0:T(1,128)}', space=vmem, size = 0x9000, scoped, tag = 'internal scratch']
  %s0 = inlined_call_operand.vmem [shape: f32[2,3,256], index: 0, kind: input, shape index: {}]
  %s1 = inlined_call_operand.vmem [shape: f32[64,3], index: 1, kind: input, shape index: {}]
  %s2 = inlined_call_operand.vmem [shape: f32[64,1], index: 2, kind: input, shape index: {}]
  %s3 = inlined_call_operand.vmem [shape: bf16[64,128], index: 3, kind: input, shape index: {}]
  %s4 = inlined_call_operand.vmem [shape: f32[1,128], index: 4, kind: input, shape index: {}]
  %s5 = inlined_call_operand.hbm [shape: bf16[128,1024], index: 5, kind: input, shape index: {}]
  %s6 = inlined_call_operand.vmem [shape: f32[1,1024], index: 6, kind: input, shape index: {}]
  %s7 = inlined_call_operand.hbm [shape: f32[2,1,1024], index: 7, kind: output, shape index: {}]
  %s8 = sld [smem:[#allocation0]]
  $region73: #{tpu_custom_call.1} parent=0
    _
  %s10 = ssub.s32 1, %s8
  %s11 = scalar_select 0, %s10, %s8
  $region1: #{tpu_custom_call.1} parent=0
    #allocation2 [shape = 'u8[262144]{0}', space=vmem, size = 0x40000, scoped, tag = 'input window, operand 5, single buffered']
    #allocation3 [shape = 's32[2]{0}', space=sflag, size = 0x8, scoped, tag = 'scoped memory for tpu_custom_call.1']
    #allocation4 [shape = 's32[2]{0}', space=sflag, size = 0x8, scoped, tag = 'scoped memory for tpu_custom_call.1']
    #allocation5 [shape = 'u8[8192]{0}', space=vmem, size = 0x2000, scoped, tag = 'output window, operand 0']
    %12 = vsyncpa [#allocation3], 0
    %13 = vsyncpa [#allocation4], 0
    %s14 = scalar_lea.sflag [#allocation4], 1
    %15 = vsyncpa %s14, 0
    loop: start=0, step=1, limit=6
    $region2: #{tpu_custom_call.1} parent=1 // loop_pre_header
      _
    $region3: #{tpu_custom_call.1} parent=1 // loop_header
      %s17 = sphi 0, %s21
      %p18 = scmp.ge.s32.totalorder %s17, 6
      %s24 = sphi 0, %s36
      %s25 = sphi 0, %s32
      %s26 = sphi 0, %s24
      %s27 = sphi 0, %s25
      %s28 = sphi 0, %s26
      %s29 = sphi 0, %s27
      %s41 = sphi 0, %s43
      %s44 = sphi 0, %s41
      %s45 = sphi 0, %s44
      %s61 = sphi 0, %s45
      %s65 = sphi 0, %s65
      %s67 = sphi 0, %s65
      %s68 = sphi 0, %s67
      %s82 = sphi 0, %s68
      %s86 = sphi 0, %s86
      %s88 = sphi 0, %s86
      %s89 = sphi 0, %s88
      %s103 = sphi 0, %s89
      %s107 = sphi 0, %s107
      %s109 = sphi 0, %s107
      %s110 = sphi 0, %s109
      %s124 = sphi 0, %s110
      %s128 = sphi 0, %s128
      %s130 = sphi 0, %s128
      %s131 = sphi 0, %s130
      %s145 = sphi 0, %s131
      %s149 = sphi 0, %s149
      %s151 = sphi 0, %s149
      %s152 = sphi 0, %s151
      %s166 = sphi 0, %s152
      %s170 = sphi 0, %s170
      %s172 = sphi 0, %s170
      %s173 = sphi 0, %s172
      %s187 = sphi 0, %s173
      %s193 = sphi 0, %s195
      %s196 = sphi 0, %s193
      %s197 = sphi 0, %s196
      %s213 = sphi 0, %s197
    $region4: #{tpu_custom_call.1} parent=1 // loop_header_branch
      %20 = sbr.rel (%p18) target = $region8
    $region5: #{tpu_custom_call.1} parent=1 // loop_body
      %s22 = ssub.s32 %s17, 1
      %s23 = ssub.s32 %s17, 2
      %s30 = sadd.s32 1, %s25
      %p31 = scmp.ge.s32.totalorder %s30, 2
      %s32 = scalar_select %p31, 0, %s30
      %s33 = sadd.s32 1, %s24
      %s34 = scalar_select %p31, %s33, %s24
      %p35 = scmp.ge.s32.totalorder %s34, 2
      %s36 = scalar_select %p35, 0, %s34
      %s37 = ssub.s32 %s24, %s36
      %s38 = ssub.s32 %s25, %s32
      %s39 = sor.u32 %s37, %s38
      %p40 = scmp.eq.s32.totalorder %s39, 0
      %s42 = sadd.s32 %s41, 1
      %s43 = scalar_select %p40, %s41, %s42
      %p46 = pneg %p40
      %p47 = scmp.eq.s32.totalorder %s17, 3
      %p48 = por %p46, %p47
      %p49 = scmp.ne.s32.totalorder %s41, %s44
      %p50 = scmp.eq.s32.totalorder %s17, 0
      %p51 = por %p49, %p50
      %p52 = scmp.ne.s32.totalorder %s41, %s44
      %p53 = scmp.eq.s32.totalorder %s22, 3
      %p54 = por %p52, %p53
      %p55 = scmp.ne.s32.totalorder %s44, %s45
      %p56 = scmp.eq.s32.totalorder %s22, 0
      %p57 = por %p55, %p56
      %p58 = scmp.ne.s32.totalorder %s44, %s45
      %p59 = scmp.eq.s32.totalorder %s23, 3
      %p60 = por %p58, %p59
      %p62 = scmp.ne.s32.totalorder %s45, %s61
      %p63 = scmp.eq.s32.totalorder %s23, 0
      %p64 = por %p62, %p63
      %s66 = sadd.s32 %s65, 1
      %p69 = scmp.eq.s32.totalorder %s17, 3
      %p70 = scmp.ne.s32.totalorder %s65, %s67
      %p71 = scmp.eq.s32.totalorder %s17, 0
      %p72 = por %p70, %p71
      %p73 = scmp.ne.s32.totalorder %s65, %s67
      %p74 = scmp.eq.s32.totalorder %s22, 3
      %p75 = por %p73, %p74
      %p76 = scmp.ne.s32.totalorder %s67, %s68
      %p77 = scmp.eq.s32.totalorder %s22, 0
      %p78 = por %p76, %p77
      %p79 = scmp.ne.s32.totalorder %s67, %s68
      %p80 = scmp.eq.s32.totalorder %s23, 3
      %p81 = por %p79, %p80
      %p83 = scmp.ne.s32.totalorder %s68, %s82
      %p84 = scmp.eq.s32.totalorder %s23, 0
      %p85 = por %p83, %p84
      %s87 = sadd.s32 %s86, 1
      %p90 = scmp.eq.s32.totalorder %s17, 3
      %p91 = scmp.ne.s32.totalorder %s86, %s88
      %p92 = scmp.eq.s32.totalorder %s17, 0
      %p93 = por %p91, %p92
      %p94 = scmp.ne.s32.totalorder %s86, %s88
      %p95 = scmp.eq.s32.totalorder %s22, 3
      %p96 = por %p94, %p95
      %p97 = scmp.ne.s32.totalorder %s88, %s89
      %p98 = scmp.eq.s32.totalorder %s22, 0
      %p99 = por %p97, %p98
      %p100 = scmp.ne.s32.totalorder %s88, %s89
      %p101 = scmp.eq.s32.totalorder %s23, 3
      %p102 = por %p100, %p101
      %p104 = scmp.ne.s32.totalorder %s89, %s103
      %p105 = scmp.eq.s32.totalorder %s23, 0
      %p106 = por %p104, %p105
      %s108 = sadd.s32 %s107, 1
      %p111 = scmp.eq.s32.totalorder %s17, 3
      %p112 = scmp.ne.s32.totalorder %s107, %s109
      %p113 = scmp.eq.s32.totalorder %s17, 0
      %p114 = por %p112, %p113
      %p115 = scmp.ne.s32.totalorder %s107, %s109
      %p116 = scmp.eq.s32.totalorder %s22, 3
      %p117 = por %p115, %p116
      %p118 = scmp.ne.s32.totalorder %s109, %s110
      %p119 = scmp.eq.s32.totalorder %s22, 0
      %p120 = por %p118, %p119
      %p121 = scmp.ne.s32.totalorder %s109, %s110
      %p122 = scmp.eq.s32.totalorder %s23, 3
      %p123 = por %p121, %p122
      %p125 = scmp.ne.s32.totalorder %s110, %s124
      %p126 = scmp.eq.s32.totalorder %s23, 0
      %p127 = por %p125, %p126
      %s129 = sadd.s32 %s128, 1
      %p132 = scmp.eq.s32.totalorder %s17, 3
      %p133 = scmp.ne.s32.totalorder %s128, %s130
      %p134 = scmp.eq.s32.totalorder %s17, 0
      %p135 = por %p133, %p134
      %p136 = scmp.ne.s32.totalorder %s128, %s130
      %p137 = scmp.eq.s32.totalorder %s22, 3
      %p138 = por %p136, %p137
      %p139 = scmp.ne.s32.totalorder %s130, %s131
      %p140 = scmp.eq.s32.totalorder %s22, 0
      %p141 = por %p139, %p140
      %p142 = scmp.ne.s32.totalorder %s130, %s131
      %p143 = scmp.eq.s32.totalorder %s23, 3
      %p144 = por %p142, %p143
      %p146 = scmp.ne.s32.totalorder %s131, %s145
      %p147 = scmp.eq.s32.totalorder %s23, 0
      %p148 = por %p146, %p147
      %s150 = sadd.s32 %s149, 1
      %p153 = scmp.eq.s32.totalorder %s17, 3
      %p154 = scmp.ne.s32.totalorder %s149, %s151
      %p155 = scmp.eq.s32.totalorder %s17, 0
      %p156 = por %p154, %p155
      %p157 = scmp.ne.s32.totalorder %s149, %s151
      %p158 = scmp.eq.s32.totalorder %s22, 3
      %p159 = por %p157, %p158
      %p160 = scmp.ne.s32.totalorder %s151, %s152
      %p161 = scmp.eq.s32.totalorder %s22, 0
      %p162 = por %p160, %p161
      %p163 = scmp.ne.s32.totalorder %s151, %s152
      %p164 = scmp.eq.s32.totalorder %s23, 3
      %p165 = por %p163, %p164
      %p167 = scmp.ne.s32.totalorder %s152, %s166
      %p168 = scmp.eq.s32.totalorder %s23, 0
      %p169 = por %p167, %p168
      %s171 = sadd.s32 %s170, 1
      %p174 = scmp.eq.s32.totalorder %s17, 3
      %p175 = scmp.ne.s32.totalorder %s170, %s172
      %p176 = scmp.eq.s32.totalorder %s17, 0
      %p177 = por %p175, %p176
      %p178 = scmp.ne.s32.totalorder %s170, %s172
      %p179 = scmp.eq.s32.totalorder %s22, 3
      %p180 = por %p178, %p179
      %p181 = scmp.ne.s32.totalorder %s172, %s173
      %p182 = scmp.eq.s32.totalorder %s22, 0
      %p183 = por %p181, %p182
      %p184 = scmp.ne.s32.totalorder %s172, %s173
      %p185 = scmp.eq.s32.totalorder %s23, 3
      %p186 = por %p184, %p185
      %p188 = scmp.ne.s32.totalorder %s173, %s187
      %p189 = scmp.eq.s32.totalorder %s23, 0
      %p190 = por %p188, %p189
      %s191 = ssub.s32 %s24, %s36
      %p192 = scmp.eq.s32.totalorder %s191, 0
      %s194 = sadd.s32 %s193, 1
      %s195 = scalar_select %p192, %s193, %s194
      %p198 = pneg %p192
      %p199 = scmp.eq.s32.totalorder %s17, 3
      %p200 = por %p198, %p199
      %p201 = scmp.ne.s32.totalorder %s193, %s196
      %p202 = scmp.eq.s32.totalorder %s17, 0
      %p203 = por %p201, %p202
      %p204 = scmp.ne.s32.totalorder %s193, %s196
      %p205 = scmp.eq.s32.totalorder %s22, 3
      %p206 = por %p204, %p205
      %p207 = scmp.ne.s32.totalorder %s196, %s197
      %p208 = scmp.eq.s32.totalorder %s22, 0
      %p209 = por %p207, %p208
      %p210 = scmp.ne.s32.totalorder %s196, %s197
      %p211 = scmp.eq.s32.totalorder %s23, 3
      %p212 = por %p210, %p211
      %p214 = scmp.ne.s32.totalorder %s197, %s213
      %p215 = scmp.eq.s32.totalorder %s23, 0
      %p216 = por %p214, %p215
      %p217 = scmp.le.s32.totalorder 1, %s17
      %p218 = scmp.lt.s32.totalorder %s17, 5
      %p219 = pnand %p217, %p218
      %p220 = pneg %p219
      // Predicated region
      $region9: #{tpu_custom_call.1} parent=5 // pred_check
        _
      $region10: #{tpu_custom_call.1} parent=5 // pred_check_branch
        %222 = sbr.rel (%p219) target = $region12
      $region11: #{tpu_custom_call.1} parent=5 // pred_region
        %s223 = ssub.s32 %s17, 1
        // Predicated region
        $region13: #{tpu_custom_call.1} parent=11 // pred_check
          %p224 = pneg %p78
        $region14: #{tpu_custom_call.1} parent=11 // pred_check_branch
          %226 = sbr.rel (%p224) target = $region16
        $region15: #{tpu_custom_call.1} parent=11 // pred_region
          _
        $region16: #{tpu_custom_call.1} parent=11 // pred_fallthru
          _
        // Predicated region
        $region17: #{tpu_custom_call.1} parent=11 // pred_check
          %p227 = pneg %p99
        $region18: #{tpu_custom_call.1} parent=11 // pred_check_branch
          %229 = sbr.rel (%p227) target = $region20
        $region19: #{tpu_custom_call.1} parent=11 // pred_region
          _
        $region20: #{tpu_custom_call.1} parent=11 // pred_fallthru
          _
        // Predicated region
        $region21: #{tpu_custom_call.1} parent=11 // pred_check
          %p230 = pneg %p120
        $region22: #{tpu_custom_call.1} parent=11 // pred_check_branch
          %232 = sbr.rel (%p230) target = $region24
        $region23: #{tpu_custom_call.1} parent=11 // pred_region
          _
        $region24: #{tpu_custom_call.1} parent=11 // pred_fallthru
          _
        // Predicated region
        $region25: #{tpu_custom_call.1} parent=11 // pred_check
          %p233 = pneg %p141
        $region26: #{tpu_custom_call.1} parent=11 // pred_check_branch
          %235 = sbr.rel (%p233) target = $region28
        $region27: #{tpu_custom_call.1} parent=11 // pred_region
          _
        $region28: #{tpu_custom_call.1} parent=11 // pred_fallthru
          _
        // Predicated region
        $region29: #{tpu_custom_call.1} parent=11 // pred_check
          %p236 = pneg %p162
        $region30: #{tpu_custom_call.1} parent=11 // pred_check_branch
          %238 = sbr.rel (%p236) target = $region32
        $region31: #{tpu_custom_call.1} parent=11 // pred_region
          %240 = vsyncadd [#allocation3], 0
          %s241 = sshll.u32 %s5, 4
          %s242 = int_to_ptr.hbm [resolvable:$true] %s241
          %s243 = sshll.u32 [#allocation2], 4
          %s244 = int_to_ptr.vmem [resolvable:$true] %s243
          %249 = dma.hbm_to_vmem [thread:$0]  %s242, 8192, %s244, [#allocation3], 512, 512, 32
        $region32: #{tpu_custom_call.1} parent=11 // pred_fallthru
          _
        // Predicated region
        $region33: #{tpu_custom_call.1} parent=11 // pred_check
          %p250 = pneg %p183
        $region34: #{tpu_custom_call.1} parent=11 // pred_check_branch
          %252 = sbr.rel (%p250) target = $region36
        $region35: #{tpu_custom_call.1} parent=11 // pred_region
          _
        $region36: #{tpu_custom_call.1} parent=11 // pred_fallthru
          _
      $region12: #{tpu_custom_call.1} parent=5 // pred_fallthru
        _
      %p253 = scmp.lt.s32.totalorder %s17, 4
      // Predicated region
      $region37: #{tpu_custom_call.1} parent=5 // pred_check
        %p254 = pneg %p253
      $region38: #{tpu_custom_call.1} parent=5 // pred_check_branch
        %256 = sbr.rel (%p254) target = $region40
      $region39: #{tpu_custom_call.1} parent=5 // pred_region
        // Predicated region
        $region41: #{tpu_custom_call.1} parent=39 // pred_check
          %p257 = pneg %p51
        $region42: #{tpu_custom_call.1} parent=39 // pred_check_branch
          %259 = sbr.rel (%p257) target = $region44
        $region43: #{tpu_custom_call.1} parent=39 // pred_region
          %p260 = scmp.lt.s32.totalorder %s24, 1
          %s261 = scalar_select %p260, %s24, 1
          %p262 = scmp.lt.s32.totalorder %s25, 1
          %s263 = scalar_select %p262, %s25, 1
          %s264 = smul.addr %s261, 2
          %s265 = sadd.s32 %s263, %s264
          %s266 = smul.addr %s265, 4
          %s267 = scalar_lea.vmem %s0, %s266
        $region44: #{tpu_custom_call.1} parent=39 // pred_fallthru
          _
      $region40: #{tpu_custom_call.1} parent=5 // pred_fallthru
        _
      %p268 = scmp.le.s32.totalorder 1, %s17
      %p269 = scmp.lt.s32.totalorder %s17, 5
      %p270 = pnand %p268, %p269
      %p271 = pneg %p270
      // Predicated region
      $region45: #{tpu_custom_call.1} parent=5 // pred_check
        _
      $region46: #{tpu_custom_call.1} parent=5 // pred_check_branch
        %273 = sbr.rel (%p270) target = $region48
      $region47: #{tpu_custom_call.1} parent=5 // pred_region
        %s274 = ssub.s32 %s17, 1
        // Predicated region
        $region49: #{tpu_custom_call.1} parent=47 // pred_check
          %p275 = pneg %p162
        $region50: #{tpu_custom_call.1} parent=47 // pred_check_branch
          %277 = sbr.rel (%p275) target = $region52
        $region51: #{tpu_custom_call.1} parent=47 // pred_region
          %279 = dma.done [#allocation3], 8192
        $region52: #{tpu_custom_call.1} parent=47 // pred_fallthru
          _
        %p280 = scmp.lt.s32.totalorder %s26, 1
        %s281 = scalar_select %p280, %s26, 1
        %p282 = scmp.lt.s32.totalorder %s27, 1
        %s283 = scalar_select %p282, %s27, 1
        %s284 = smul.addr %s281, 2
        %s285 = sadd.s32 %s283, %s284
        %s286 = smul.addr %s285, 4
        %s287 = scalar_lea.vmem %s0, %s286
        %p288 = pneg %p57
        %p289 = pneg %p54
        %p290 = pneg %p78
        %p291 = pneg %p75
        %p292 = pneg %p99
        %p293 = pneg %p96
        %p294 = pneg %p120
        %p295 = pneg %p117
        %p296 = pneg %p141
        %p297 = pneg %p138
        %p298 = pneg %p162
        %p299 = pneg %p159
        %p300 = pneg %p183
        %p301 = pneg %p180
        %p302 = pneg %p209
        %p303 = pneg %p206
        %s304 = sand.u32 %s196, 1
        %s305 = scalar_lea.sflag [#allocation4], %s304
        %s306 = sand.u32 %s196, 1
        %s307 = smul.addr %s306, 8
        %s308 = scalar_lea.vmem [#allocation5], %s307
        %p309 = scmp.lt.s32.totalorder %s26, 1
        %s310 = scalar_select %p309, %s26, 1
        %p311 = scmp.lt.s32.totalorder %s27, 1
        %s312 = scalar_select %p311, %s27, 1
        %s313 = smul.addr %s310, 2
        %s314 = sadd.s32 %s312, %s313
        %s315 = smul.addr %s314, 4
        %s316 = scalar_lea.vmem %s0, %s315
        %v318 = vld [vmem:[%s316] sm:$0x7]
        %v319 = vld [vmem:[%s1] sm:$0xff]
        %v320 = vld [vmem:[%s1 + $0x8] sm:$0xff]
        %v321 = vld [vmem:[%s1 + $0x10] sm:$0xff]
        %v322 = vld [vmem:[%s1 + $0x18] sm:$0xff]
        %v323 = vld [vmem:[%s1 + $0x20] sm:$0xff]
        %v324 = vld [vmem:[%s1 + $0x28] sm:$0xff]
        %v325 = vld [vmem:[%s1 + $0x30] sm:$0xff]
        %v326 = vld [vmem:[%s1 + $0x38] sm:$0xff]
        %328 = vset.pattern.permute.xlu0 0
        %329 = vperm.xlu0 %328, %v319
        %v330 = vpop.permute.xlu0 %329
        %333 = vset.pattern.permute.xlu0 0
        %334 = vperm.xlu0 %333, %v320
        %v335 = vpop.permute.xlu0 %334
        %338 = vset.pattern.permute.xlu0 0
        %339 = vperm.xlu0 %338, %v321
        %v340 = vpop.permute.xlu0 %339
        %343 = vset.pattern.permute.xlu0 0
        %344 = vperm.xlu0 %343, %v322
        %v345 = vpop.permute.xlu0 %344
        %348 = vset.pattern.permute.xlu0 0
        %349 = vperm.xlu0 %348, %v323
        %v350 = vpop.permute.xlu0 %349
        %353 = vset.pattern.permute.xlu0 0
        %354 = vperm.xlu0 %353, %v324
        %v355 = vpop.permute.xlu0 %354
        %358 = vset.pattern.permute.xlu0 0
        %359 = vperm.xlu0 %358, %v325
        %v360 = vpop.permute.xlu0 %359
        %363 = vset.pattern.permute.xlu0 0
        %364 = vperm.xlu0 %363, %v326
        %v365 = vpop.permute.xlu0 %364
        %v367 = vperm.slane %v318, 0
        %v368 = vmul.f32 %v330, %v367
        %v369 = vmul.f32 %v335, %v367
        %v370 = vmul.f32 %v340, %v367
        %v371 = vmul.f32 %v345, %v367
        %v372 = vmul.f32 %v350, %v367
        %v373 = vmul.f32 %v355, %v367
        %v374 = vmul.f32 %v360, %v367
        %v375 = vmul.f32 %v365, %v367
        %376 = vset.pattern.permute.xlu0 1
        %377 = vperm.xlu0 %376, %v319
        %v378 = vpop.permute.xlu0 %377
        %380 = vset.pattern.permute.xlu0 1
        %381 = vperm.xlu0 %380, %v320
        %v382 = vpop.permute.xlu0 %381
        %384 = vset.pattern.permute.xlu0 1
        %385 = vperm.xlu0 %384, %v321
        %v386 = vpop.permute.xlu0 %385
        %388 = vset.pattern.permute.xlu0 1
        %389 = vperm.xlu0 %388, %v322
        %v390 = vpop.permute.xlu0 %389
        %392 = vset.pattern.permute.xlu0 1
        %393 = vperm.xlu0 %392, %v323
        %v394 = vpop.permute.xlu0 %393
        %396 = vset.pattern.permute.xlu0 1
        %397 = vperm.xlu0 %396, %v324
        %v398 = vpop.permute.xlu0 %397
        %400 = vset.pattern.permute.xlu0 1
        %401 = vperm.xlu0 %400, %v325
        %v402 = vpop.permute.xlu0 %401
        %404 = vset.pattern.permute.xlu0 1
        %405 = vperm.xlu0 %404, %v326
        %v406 = vpop.permute.xlu0 %405
        %v408 = vperm.slane %v318, 1
        %v409 = vmul.f32 %v378, %v408
        %v410 = vmul.f32 %v382, %v408
        %v411 = vmul.f32 %v386, %v408
        %v412 = vmul.f32 %v390, %v408
        %v413 = vmul.f32 %v394, %v408
        %v414 = vmul.f32 %v398, %v408
        %v415 = vmul.f32 %v402, %v408
        %v416 = vmul.f32 %v406, %v408
        %v417 = vadd.f32 %v368, %v409
        %v418 = vadd.f32 %v369, %v410
        %v419 = vadd.f32 %v370, %v411
        %v420 = vadd.f32 %v371, %v412
        %v421 = vadd.f32 %v372, %v413
        %v422 = vadd.f32 %v373, %v414
        %v423 = vadd.f32 %v374, %v415
        %v424 = vadd.f32 %v375, %v416
        %425 = vset.pattern.permute.xlu0 2
        %426 = vperm.xlu0 %425, %v319
        %v427 = vpop.permute.xlu0 %426
        %429 = vset.pattern.permute.xlu0 2
        %430 = vperm.xlu0 %429, %v320
        %v431 = vpop.permute.xlu0 %430
        %433 = vset.pattern.permute.xlu0 2
        %434 = vperm.xlu0 %433, %v321
        %v435 = vpop.permute.xlu0 %434
        %437 = vset.pattern.permute.xlu0 2
        %438 = vperm.xlu0 %437, %v322
        %v439 = vpop.permute.xlu0 %438
        %441 = vset.pattern.permute.xlu0 2
        %442 = vperm.xlu0 %441, %v323
        %v443 = vpop.permute.xlu0 %442
        %445 = vset.pattern.permute.xlu0 2
        %446 = vperm.xlu0 %445, %v324
        %v447 = vpop.permute.xlu0 %446
        %449 = vset.pattern.permute.xlu0 2
        %450 = vperm.xlu0 %449, %v325
        %v451 = vpop.permute.xlu0 %450
        %453 = vset.pattern.permute.xlu0 2
        %454 = vperm.xlu0 %453, %v326
        %v455 = vpop.permute.xlu0 %454
        %v457 = vperm.slane %v318, 2
        %v458 = vmul.f32 %v427, %v457
        %v459 = vmul.f32 %v431, %v457
        %v460 = vmul.f32 %v435, %v457
        %v461 = vmul.f32 %v439, %v457
        %v462 = vmul.f32 %v443, %v457
        %v463 = vmul.f32 %v447, %v457
        %v464 = vmul.f32 %v451, %v457
        %v465 = vmul.f32 %v455, %v457
        %v466 = vadd.f32 %v417, %v458
        %v467 = vadd.f32 %v418, %v459
        %v468 = vadd.f32 %v419, %v460
        %v469 = vadd.f32 %v420, %v461
        %v470 = vadd.f32 %v421, %v462
        %v471 = vadd.f32 %v422, %v463
        %v472 = vadd.f32 %v423, %v464
        %v473 = vadd.f32 %v424, %v465
        %v474 = vld [vmem:[%s2] sm:$0xff]
        %v475 = vld [vmem:[%s2 + $0x8] sm:$0xff]
        %v476 = vld [vmem:[%s2 + $0x10] sm:$0xff]
        %v477 = vld [vmem:[%s2 + $0x18] sm:$0xff]
        %v478 = vld [vmem:[%s2 + $0x20] sm:$0xff]
        %v479 = vld [vmem:[%s2 + $0x28] sm:$0xff]
        %v480 = vld [vmem:[%s2 + $0x30] sm:$0xff]
        %v481 = vld [vmem:[%s2 + $0x38] sm:$0xff]
        %483 = vset.pattern.permute.xlu0 0
        %484 = vperm.xlu0 %483, %v474
        %v485 = vpop.permute.xlu0 %484
        %488 = vset.pattern.permute.xlu0 0
        %489 = vperm.xlu0 %488, %v475
        %v490 = vpop.permute.xlu0 %489
        %493 = vset.pattern.permute.xlu0 0
        %494 = vperm.xlu0 %493, %v476
        %v495 = vpop.permute.xlu0 %494
        %498 = vset.pattern.permute.xlu0 0
        %499 = vperm.xlu0 %498, %v477
        %v500 = vpop.permute.xlu0 %499
        %503 = vset.pattern.permute.xlu0 0
        %504 = vperm.xlu0 %503, %v478
        %v505 = vpop.permute.xlu0 %504
        %508 = vset.pattern.permute.xlu0 0
        %509 = vperm.xlu0 %508, %v479
        %v510 = vpop.permute.xlu0 %509
        %513 = vset.pattern.permute.xlu0 0
        %514 = vperm.xlu0 %513, %v480
        %v515 = vpop.permute.xlu0 %514
        %518 = vset.pattern.permute.xlu0 0
        %519 = vperm.xlu0 %518, %v481
        %v520 = vpop.permute.xlu0 %519
        %v522 = vadd.f32 %v466, %v485
        %v523 = vadd.f32 %v467, %v490
        %v524 = vadd.f32 %v468, %v495
        %v525 = vadd.f32 %v469, %v500
        %v526 = vadd.f32 %v470, %v505
        %v527 = vadd.f32 %v471, %v510
        %v528 = vadd.f32 %v472, %v515
        %v529 = vadd.f32 %v473, %v520
        %v530 = vmax.f32 %v522, 0.0
        %v531 = vmax.f32 %v523, 0.0
        %v532 = vmax.f32 %v524, 0.0
        %v533 = vmax.f32 %v525, 0.0
        %v534 = vmax.f32 %v526, 0.0
        %v535 = vmax.f32 %v527, 0.0
        %v536 = vmax.f32 %v528, 0.0
        %v537 = vmax.f32 %v529, 0.0
        %538 = vxpose.xlu0.b32.start [1/16] %v530, 128
        %539 = vxpose.xlu0.b32.cont [2/16] %v531, 128
        %540 = vxpose.xlu0.b32.cont [3/16] %v532, 128
        %541 = vxpose.xlu0.b32.cont [4/16] %v533, 128
        %542 = vxpose.xlu0.b32.cont [5/16] %v534, 128
        %543 = vxpose.xlu0.b32.cont [6/16] %v535, 128
        %544 = vxpose.xlu0.b32.cont [7/16] %v536, 128
        %545 = vxpose.xlu0.b32.cont [8/16] %v537, 128
        %546 = vxpose.xlu0.b32.cont [9/16] 0.0, 128
        %547 = vxpose.xlu0.b32.cont [10/16] 0.0, 128
        %548 = vxpose.xlu0.b32.cont [11/16] 0.0, 128
        %549 = vxpose.xlu0.b32.cont [12/16] 0.0, 128
        %550 = vxpose.xlu0.b32.cont [13/16] 0.0, 128
        %551 = vxpose.xlu0.b32.cont [14/16] 0.0, 128
        %552 = vxpose.xlu0.b32.cont [15/16] 0.0, 128
        %553 = vxpose.xlu0.b32.end [16/16] 0.0, 128
        %v554 = vpop.trf.xlu0
        %v555 = vpop.trf.xlu0
        %v556 = vpop.trf.xlu0
        %v557 = vpop.trf.xlu0
        %v558 = vpop.trf.xlu0
        %v559 = vpop.trf.xlu0
        %v560 = vpop.trf.xlu0
        %v561 = vpop.trf.xlu0
        %v562 = vpop.trf.xlu0
        %v563 = vpop.trf.xlu0
        %v564 = vpop.trf.xlu0
        %v565 = vpop.trf.xlu0
        %v566 = vpop.trf.xlu0
        %v567 = vpop.trf.xlu0
        %v568 = vpop.trf.xlu0
        %v569 = vpop.trf.xlu0
        %v570 = vpack.c.bf16 %v555, %v554
        %v571 = vpack.c.bf16 %v557, %v556
        %v572 = vpack.c.bf16 %v559, %v558
        %v573 = vpack.c.bf16 %v561, %v560
        %v574 = vpack.c.bf16 %v563, %v562
        %v575 = vpack.c.bf16 %v565, %v564
        %v576 = vpack.c.bf16 %v567, %v566
        %v577 = vpack.c.bf16 %v569, %v568
        %v578 = vld [vmem:[%s3] sm:$0xf]
        %v579 = vld [vmem:[%s3 + $0x4] sm:$0xf]
        %v580 = vld [vmem:[%s3 + $0x8] sm:$0xf]
        %v581 = vld [vmem:[%s3 + $0xc] sm:$0xf]
        %v582 = vld [vmem:[%s3 + $0x10] sm:$0xf]
        %v583 = vld [vmem:[%s3 + $0x14] sm:$0xf]
        %v584 = vld [vmem:[%s3 + $0x18] sm:$0xf]
        %v585 = vld [vmem:[%s3 + $0x1c] sm:$0xf]
        %v586 = vld [vmem:[%s4] sm:$0x1]
        %v588 = vperm.slane %v586, 0
        %v598 = vunpack.c.l.b16 %v578
        %v599 = vunpack.c.l.b16 %v579
        %v600 = vunpack.c.l.b16 %v580
        %v601 = vunpack.c.l.b16 %v581
        %v602 = vunpack.c.l.b16 %v582
        %v603 = vunpack.c.l.b16 %v583
        %v604 = vunpack.c.l.b16 %v584
        %v605 = vunpack.c.l.b16 %v585
        %v606 = vpack.c.b16 %v599, %v598
        %v607 = vpack.c.b16 %v601, %v600
        %v608 = vpack.c.b16 %v603, %v602
        %v609 = vpack.c.b16 %v605, %v604
        %vm614 = vcmask 523264
        %v616 = vsel %vm614, %v570, 0
        %v619 = vsel %vm614, %v571, 0
        %v622 = vsel %vm614, %v572, 0
        %v625 = vsel %vm614, %v573, 0
        %v628 = vsel %vm614, %v574, 0
        %v631 = vsel %vm614, %v575, 0
        %v634 = vsel %vm614, %v576, 0
        %v637 = vsel %vm614, %v577, 0
        %639 = vmatpush.bf16.msra.mxu0 0
        %640 = vmatpush.bf16.msra.mxu0 0
        %641 = vmatpush.bf16.msra.mxu0 0
        %642 = vmatpush.bf16.msra.mxu0 0
        %643 = vmatpush.bf16.msra.mxu0 %v609
        %644 = vmatpush.bf16.msra.mxu0 %v608
        %645 = vmatpush.bf16.msra.mxu0 %v607
        %646 = vmatpush.bf16.msra.mxu0 %v606
        %647 = vmatmul.bf16.gmra.mxu0 %v616
        %v648 = vpop.f32.mrf.mxu0
        %v649 = vadd.f32 %v588, %v648
        %v650 = vpop.f32.mrf.mxu0
        %v651 = vadd.f32 %v588, %v650
        %652 = vmatmul.bf16.gmra.mxu0 %v619
        %v653 = vpop.f32.mrf.mxu0
        %v654 = vadd.f32 %v588, %v653
        %v655 = vpop.f32.mrf.mxu0
        %v656 = vadd.f32 %v588, %v655
        %657 = vmatmul.bf16.gmra.mxu0 %v622
        %v658 = vpop.f32.mrf.mxu0
        %v659 = vadd.f32 %v588, %v658
        %v660 = vpop.f32.mrf.mxu0
        %v661 = vadd.f32 %v588, %v660
        %662 = vmatmul.bf16.gmra.mxu0 %v625
        %v663 = vpop.f32.mrf.mxu0
        %v664 = vadd.f32 %v588, %v663
        %v665 = vpop.f32.mrf.mxu0
        %v666 = vadd.f32 %v588, %v665
        %667 = vmatmul.bf16.gmra.mxu0 %v628
        %v668 = vpop.f32.mrf.mxu0
        %v669 = vadd.f32 %v588, %v668
        %v670 = vpop.f32.mrf.mxu0
        %v671 = vadd.f32 %v588, %v670
        %672 = vmatmul.bf16.gmra.mxu0 %v631
        %v673 = vpop.f32.mrf.mxu0
        %v674 = vadd.f32 %v588, %v673
        %v675 = vpop.f32.mrf.mxu0
        %v676 = vadd.f32 %v588, %v675
        %677 = vmatmul.bf16.gmra.mxu0 %v634
        %v678 = vpop.f32.mrf.mxu0
        %v679 = vadd.f32 %v588, %v678
        %v680 = vpop.f32.mrf.mxu0
        %v681 = vadd.f32 %v588, %v680
        %682 = vmatmul.bf16.gmra.mxu0 %v637
        %v683 = vpop.f32.mrf.mxu0
        %v684 = vadd.f32 %v588, %v683
        %v685 = vpop.f32.mrf.mxu0
        %v686 = vadd.f32 %v588, %v685
        %687 = vdwg.mxu0
        %v688 = vmax.f32 %v649, 0.0
        %v689 = vmax.f32 %v651, 0.0
        %v690 = vmax.f32 %v654, 0.0
        %v691 = vmax.f32 %v656, 0.0
        %v692 = vmax.f32 %v659, 0.0
        %v693 = vmax.f32 %v661, 0.0
        %v694 = vmax.f32 %v664, 0.0
        %v695 = vmax.f32 %v666, 0.0
        %v696 = vmax.f32 %v669, 0.0
        %v697 = vmax.f32 %v671, 0.0
        %v698 = vmax.f32 %v674, 0.0
        %v699 = vmax.f32 %v676, 0.0
        %v700 = vmax.f32 %v679, 0.0
        %v701 = vmax.f32 %v681, 0.0
        %v702 = vmax.f32 %v684, 0.0
        %v703 = vmax.f32 %v686, 0.0
        %v704 = vpack.c.bf16 %v689, %v688
        %v705 = vpack.c.bf16 %v691, %v690
        %v706 = vpack.c.bf16 %v693, %v692
        %v707 = vpack.c.bf16 %v695, %v694
        %v708 = vpack.c.bf16 %v697, %v696
        %v709 = vpack.c.bf16 %v699, %v698
        %v710 = vpack.c.bf16 %v701, %v700
        %v711 = vpack.c.bf16 %v703, %v702
        %v712 = vld [vmem:[#allocation2] sm:$0xff]
        %v713 = vld [vmem:[#allocation2 + $0x8] sm:$0xff]
        %v714 = vld [vmem:[#allocation2 + $0x10] sm:$0xff]
        %v715 = vld [vmem:[#allocation2 + $0x18] sm:$0xff]
        %v716 = vld [vmem:[#allocation2 + $0x20] sm:$0xff]
        %v717 = vld [vmem:[#allocation2 + $0x28] sm:$0xff]
        %v718 = vld [vmem:[#allocation2 + $0x30] sm:$0xff]
        %v719 = vld [vmem:[#allocation2 + $0x38] sm:$0xff]
        %v720 = vld [vmem:[#allocation2 + $0x40] sm:$0xff]
        %v721 = vld [vmem:[#allocation2 + $0x48] sm:$0xff]
        %v722 = vld [vmem:[#allocation2 + $0x50] sm:$0xff]
        %v723 = vld [vmem:[#allocation2 + $0x58] sm:$0xff]
        %v724 = vld [vmem:[#allocation2 + $0x60] sm:$0xff]
        %v725 = vld [vmem:[#allocation2 + $0x68] sm:$0xff]
        %v726 = vld [vmem:[#allocation2 + $0x70] sm:$0xff]
        %v727 = vld [vmem:[#allocation2 + $0x78] sm:$0xff]
        %v728 = vld [vmem:[#allocation2 + $0x80] sm:$0xff]
        %v729 = vld [vmem:[#allocation2 + $0x88] sm:$0xff]
        %v730 = vld [vmem:[#allocation2 + $0x90] sm:$0xff]
        %v731 = vld [vmem:[#allocation2 + $0x98] sm:$0xff]
        %v732 = vld [vmem:[#allocation2 + $0xa0] sm:$0xff]
        %v733 = vld [vmem:[#allocation2 + $0xa8] sm:$0xff]
        %v734 = vld [vmem:[#allocation2 + $0xb0] sm:$0xff]
        %v735 = vld [vmem:[#allocation2 + $0xb8] sm:$0xff]
        %v736 = vld [vmem:[#allocation2 + $0xc0] sm:$0xff]
        %v737 = vld [vmem:[#allocation2 + $0xc8] sm:$0xff]
        %v738 = vld [vmem:[#allocation2 + $0xd0] sm:$0xff]
        %v739 = vld [vmem:[#allocation2 + $0xd8] sm:$0xff]
        %v740 = vld [vmem:[#allocation2 + $0xe0] sm:$0xff]
        %v741 = vld [vmem:[#allocation2 + $0xe8] sm:$0xff]
        %v742 = vld [vmem:[#allocation2 + $0xf0] sm:$0xff]
        %v743 = vld [vmem:[#allocation2 + $0xf8] sm:$0xff]
        %v744 = vld [vmem:[#allocation2 + $0x100] sm:$0xff]
        %v745 = vld [vmem:[#allocation2 + $0x108] sm:$0xff]
        %v746 = vld [vmem:[#allocation2 + $0x110] sm:$0xff]
        %v747 = vld [vmem:[#allocation2 + $0x118] sm:$0xff]
        %v748 = vld [vmem:[#allocation2 + $0x120] sm:$0xff]
        %v749 = vld [vmem:[#allocation2 + $0x128] sm:$0xff]
        %v750 = vld [vmem:[#allocation2 + $0x130] sm:$0xff]
        %v751 = vld [vmem:[#allocation2 + $0x138] sm:$0xff]
        %v752 = vld [vmem:[#allocation2 + $0x140] sm:$0xff]
        %v753 = vld [vmem:[#allocation2 + $0x148] sm:$0xff]
        %v754 = vld [vmem:[#allocation2 + $0x150] sm:$0xff]
        %v755 = vld [vmem:[#allocation2 + $0x158] sm:$0xff]
        %v756 = vld [vmem:[#allocation2 + $0x160] sm:$0xff]
        %v757 = vld [vmem:[#allocation2 + $0x168] sm:$0xff]
        %v758 = vld [vmem:[#allocation2 + $0x170] sm:$0xff]
        %v759 = vld [vmem:[#allocation2 + $0x178] sm:$0xff]
        %v760 = vld [vmem:[#allocation2 + $0x180] sm:$0xff]
        %v761 = vld [vmem:[#allocation2 + $0x188] sm:$0xff]
        %v762 = vld [vmem:[#allocation2 + $0x190] sm:$0xff]
        %v763 = vld [vmem:[#allocation2 + $0x198] sm:$0xff]
        %v764 = vld [vmem:[#allocation2 + $0x1a0] sm:$0xff]
        %v765 = vld [vmem:[#allocation2 + $0x1a8] sm:$0xff]
        %v766 = vld [vmem:[#allocation2 + $0x1b0] sm:$0xff]
        %v767 = vld [vmem:[#allocation2 + $0x1b8] sm:$0xff]
        %v768 = vld [vmem:[#allocation2 + $0x1c0] sm:$0xff]
        %v769 = vld [vmem:[#allocation2 + $0x1c8] sm:$0xff]
        %v770 = vld [vmem:[#allocation2 + $0x1d0] sm:$0xff]
        %v771 = vld [vmem:[#allocation2 + $0x1d8] sm:$0xff]
        %v772 = vld [vmem:[#allocation2 + $0x1e0] sm:$0xff]
        %v773 = vld [vmem:[#allocation2 + $0x1e8] sm:$0xff]
        %v774 = vld [vmem:[#allocation2 + $0x1f0] sm:$0xff]
        %v775 = vld [vmem:[#allocation2 + $0x1f8] sm:$0xff]
        %v776 = vld [vmem:[%s6] sm:$0xff]
        %v778 = vperm.slane %v776, 0
        %v779 = vperm.slane %v776, 1
        %v780 = vperm.slane %v776, 2
        %v781 = vperm.slane %v776, 3
        %v782 = vperm.slane %v776, 4
        %v783 = vperm.slane %v776, 5
        %v784 = vperm.slane %v776, 6
        %v785 = vperm.slane %v776, 7
        %v858 = vunpack.c.l.b16 %v712
        %v859 = vunpack.c.h.b16 %v712
        %v860 = vunpack.c.l.b16 %v713
        %v861 = vunpack.c.h.b16 %v713
        %v862 = vunpack.c.l.b16 %v714
        %v863 = vunpack.c.h.b16 %v714
        %v864 = vunpack.c.l.b16 %v715
        %v865 = vunpack.c.h.b16 %v715
        %v866 = vunpack.c.l.b16 %v716
        %v867 = vunpack.c.h.b16 %v716
        %v868 = vunpack.c.l.b16 %v717
        %v869 = vunpack.c.h.b16 %v717
        %v870 = vunpack.c.l.b16 %v718
        %v871 = vunpack.c.h.b16 %v718
        %v872 = vunpack.c.l.b16 %v719
        %v873 = vunpack.c.h.b16 %v719
        %v874 = vunpack.c.l.b16 %v720
        %v875 = vunpack.c.h.b16 %v720
        %v876 = vunpack.c.l.b16 %v721
        %v877 = vunpack.c.h.b16 %v721
        %v878 = vunpack.c.l.b16 %v722
        %v879 = vunpack.c.h.b16 %v722
        %v880 = vunpack.c.l.b16 %v723
        %v881 = vunpack.c.h.b16 %v723
        %v882 = vunpack.c.l.b16 %v724
        %v883 = vunpack.c.h.b16 %v724
        %v884 = vunpack.c.l.b16 %v725
        %v885 = vunpack.c.h.b16 %v725
        %v886 = vunpack.c.l.b16 %v726
        %v887 = vunpack.c.h.b16 %v726
        %v888 = vunpack.c.l.b16 %v727
        %v889 = vunpack.c.h.b16 %v727
        %v890 = vunpack.c.l.b16 %v728
        %v891 = vunpack.c.h.b16 %v728
        %v892 = vunpack.c.l.b16 %v729
        %v893 = vunpack.c.h.b16 %v729
        %v894 = vunpack.c.l.b16 %v730
        %v895 = vunpack.c.h.b16 %v730
        %v896 = vunpack.c.l.b16 %v731
        %v897 = vunpack.c.h.b16 %v731
        %v898 = vunpack.c.l.b16 %v732
        %v899 = vunpack.c.h.b16 %v732
        %v900 = vunpack.c.l.b16 %v733
        %v901 = vunpack.c.h.b16 %v733
        %v902 = vunpack.c.l.b16 %v734
        %v903 = vunpack.c.h.b16 %v734
        %v904 = vunpack.c.l.b16 %v735
        %v905 = vunpack.c.h.b16 %v735
        %v906 = vunpack.c.l.b16 %v736
        %v907 = vunpack.c.h.b16 %v736
        %v908 = vunpack.c.l.b16 %v737
        %v909 = vunpack.c.h.b16 %v737
        %v910 = vunpack.c.l.b16 %v738
        %v911 = vunpack.c.h.b16 %v738
        %v912 = vunpack.c.l.b16 %v739
        %v913 = vunpack.c.h.b16 %v739
        %v914 = vunpack.c.l.b16 %v740
        %v915 = vunpack.c.h.b16 %v740
        %v916 = vunpack.c.l.b16 %v741
        %v917 = vunpack.c.h.b16 %v741
        %v918 = vunpack.c.l.b16 %v742
        %v919 = vunpack.c.h.b16 %v742
        %v920 = vunpack.c.l.b16 %v743
        %v921 = vunpack.c.h.b16 %v743
        %v922 = vunpack.c.l.b16 %v744
        %v923 = vunpack.c.h.b16 %v744
        %v924 = vunpack.c.l.b16 %v745
        %v925 = vunpack.c.h.b16 %v745
        %v926 = vunpack.c.l.b16 %v746
        %v927 = vunpack.c.h.b16 %v746
        %v928 = vunpack.c.l.b16 %v747
        %v929 = vunpack.c.h.b16 %v747
        %v930 = vunpack.c.l.b16 %v748
        %v931 = vunpack.c.h.b16 %v748
        %v932 = vunpack.c.l.b16 %v749
        %v933 = vunpack.c.h.b16 %v749
        %v934 = vunpack.c.l.b16 %v750
        %v935 = vunpack.c.h.b16 %v750
        %v936 = vunpack.c.l.b16 %v751
        %v937 = vunpack.c.h.b16 %v751
        %v938 = vunpack.c.l.b16 %v752
        %v939 = vunpack.c.h.b16 %v752
        %v940 = vunpack.c.l.b16 %v753
        %v941 = vunpack.c.h.b16 %v753
        %v942 = vunpack.c.l.b16 %v754
        %v943 = vunpack.c.h.b16 %v754
        %v944 = vunpack.c.l.b16 %v755
        %v945 = vunpack.c.h.b16 %v755
        %v946 = vunpack.c.l.b16 %v756
        %v947 = vunpack.c.h.b16 %v756
        %v948 = vunpack.c.l.b16 %v757
        %v949 = vunpack.c.h.b16 %v757
        %v950 = vunpack.c.l.b16 %v758
        %v951 = vunpack.c.h.b16 %v758
        %v952 = vunpack.c.l.b16 %v759
        %v953 = vunpack.c.h.b16 %v759
        %v954 = vunpack.c.l.b16 %v760
        %v955 = vunpack.c.h.b16 %v760
        %v956 = vunpack.c.l.b16 %v761
        %v957 = vunpack.c.h.b16 %v761
        %v958 = vunpack.c.l.b16 %v762
        %v959 = vunpack.c.h.b16 %v762
        %v960 = vunpack.c.l.b16 %v763
        %v961 = vunpack.c.h.b16 %v763
        %v962 = vunpack.c.l.b16 %v764
        %v963 = vunpack.c.h.b16 %v764
        %v964 = vunpack.c.l.b16 %v765
        %v965 = vunpack.c.h.b16 %v765
        %v966 = vunpack.c.l.b16 %v766
        %v967 = vunpack.c.h.b16 %v766
        %v968 = vunpack.c.l.b16 %v767
        %v969 = vunpack.c.h.b16 %v767
        %v970 = vunpack.c.l.b16 %v768
        %v971 = vunpack.c.h.b16 %v768
        %v972 = vunpack.c.l.b16 %v769
        %v973 = vunpack.c.h.b16 %v769
        %v974 = vunpack.c.l.b16 %v770
        %v975 = vunpack.c.h.b16 %v770
        %v976 = vunpack.c.l.b16 %v771
        %v977 = vunpack.c.h.b16 %v771
        %v978 = vunpack.c.l.b16 %v772
        %v979 = vunpack.c.h.b16 %v772
        %v980 = vunpack.c.l.b16 %v773
        %v981 = vunpack.c.h.b16 %v773
        %v982 = vunpack.c.l.b16 %v774
        %v983 = vunpack.c.h.b16 %v774
        %v984 = vunpack.c.l.b16 %v775
        %v985 = vunpack.c.h.b16 %v775
        %v986 = vpack.c.b16 %v866, %v858
        %v987 = vpack.c.b16 %v867, %v859
        %v988 = vpack.c.b16 %v868, %v860
        %v989 = vpack.c.b16 %v869, %v861
        %v990 = vpack.c.b16 %v870, %v862
        %v991 = vpack.c.b16 %v871, %v863
        %v992 = vpack.c.b16 %v872, %v864
        %v993 = vpack.c.b16 %v873, %v865
        %v994 = vpack.c.b16 %v882, %v874
        %v995 = vpack.c.b16 %v883, %v875
        %v996 = vpack.c.b16 %v884, %v876
        %v997 = vpack.c.b16 %v885, %v877
        %v998 = vpack.c.b16 %v886, %v878
        %v999 = vpack.c.b16 %v887, %v879
        %v1000 = vpack.c.b16 %v888, %v880
        %v1001 = vpack.c.b16 %v889, %v881
        %v1002 = vpack.c.b16 %v898, %v890
        %v1003 = vpack.c.b16 %v899, %v891
        %v1004 = vpack.c.b16 %v900, %v892
        %v1005 = vpack.c.b16 %v901, %v893
        %v1006 = vpack.c.b16 %v902, %v894
        %v1007 = vpack.c.b16 %v903, %v895
        %v1008 = vpack.c.b16 %v904, %v896
        %v1009 = vpack.c.b16 %v905, %v897
        %v1010 = vpack.c.b16 %v914, %v906
        %v1011 = vpack.c.b16 %v915, %v907
        %v1012 = vpack.c.b16 %v916, %v908
        %v1013 = vpack.c.b16 %v917, %v909
        %v1014 = vpack.c.b16 %v918, %v910
        %v1015 = vpack.c.b16 %v919, %v911
        %v1016 = vpack.c.b16 %v920, %v912
        %v1017 = vpack.c.b16 %v921, %v913
        %v1018 = vpack.c.b16 %v930, %v922
        %v1019 = vpack.c.b16 %v931, %v923
        %v1020 = vpack.c.b16 %v932, %v924
        %v1021 = vpack.c.b16 %v933, %v925
        %v1022 = vpack.c.b16 %v934, %v926
        %v1023 = vpack.c.b16 %v935, %v927
        %v1024 = vpack.c.b16 %v936, %v928
        %v1025 = vpack.c.b16 %v937, %v929
        %v1026 = vpack.c.b16 %v946, %v938
        %v1027 = vpack.c.b16 %v947, %v939
        %v1028 = vpack.c.b16 %v948, %v940
        %v1029 = vpack.c.b16 %v949, %v941
        %v1030 = vpack.c.b16 %v950, %v942
        %v1031 = vpack.c.b16 %v951, %v943
        %v1032 = vpack.c.b16 %v952, %v944
        %v1033 = vpack.c.b16 %v953, %v945
        %v1034 = vpack.c.b16 %v962, %v954
        %v1035 = vpack.c.b16 %v963, %v955
        %v1036 = vpack.c.b16 %v964, %v956
        %v1037 = vpack.c.b16 %v965, %v957
        %v1038 = vpack.c.b16 %v966, %v958
        %v1039 = vpack.c.b16 %v967, %v959
        %v1040 = vpack.c.b16 %v968, %v960
        %v1041 = vpack.c.b16 %v969, %v961
        %v1042 = vpack.c.b16 %v978, %v970
        %v1043 = vpack.c.b16 %v979, %v971
        %v1044 = vpack.c.b16 %v980, %v972
        %v1045 = vpack.c.b16 %v981, %v973
        %v1046 = vpack.c.b16 %v982, %v974
        %v1047 = vpack.c.b16 %v983, %v975
        %v1048 = vpack.c.b16 %v984, %v976
        %v1049 = vpack.c.b16 %v985, %v977
        %1114 = vmatpush.bf16.msra.mxu0 %v1042
        %1115 = vmatpush.bf16.msra.mxu0 %v1034
        %1116 = vmatpush.bf16.msra.mxu0 %v1026
        %1117 = vmatpush.bf16.msra.mxu0 %v1018
        %1118 = vmatpush.bf16.msra.mxu0 %v1010
        %1119 = vmatpush.bf16.msra.mxu0 %v1002
        %1120 = vmatpush.bf16.msra.mxu0 %v994
        %1121 = vmatpush.bf16.msra.mxu0 %v986
        %1122 = vmatmul.bf16.gmra.mxu0 %v704
        %v1123 = vpop.f32.mrf.mxu0
        %v1124 = vadd.f32 %v778, %v1123
        %v1125 = vpop.f32.mrf.mxu0
        %v1126 = vadd.f32 %v778, %v1125
        %1127 = vmatmul.bf16.gmra.mxu0 %v705
        %v1128 = vpop.f32.mrf.mxu0
        %v1129 = vadd.f32 %v778, %v1128
        %v1130 = vpop.f32.mrf.mxu0
        %v1131 = vadd.f32 %v778, %v1130
        %1132 = vmatmul.bf16.gmra.mxu0 %v706
        %v1133 = vpop.f32.mrf.mxu0
        %v1134 = vadd.f32 %v778, %v1133
        %v1135 = vpop.f32.mrf.mxu0
        %v1136 = vadd.f32 %v778, %v1135
        %1137 = vmatmul.bf16.gmra.mxu0 %v707
        %v1138 = vpop.f32.mrf.mxu0
        %v1139 = vadd.f32 %v778, %v1138
        %v1140 = vpop.f32.mrf.mxu0
        %v1141 = vadd.f32 %v778, %v1140
        %1142 = vmatmul.bf16.gmra.mxu0 %v708
        %v1143 = vpop.f32.mrf.mxu0
        %v1144 = vadd.f32 %v778, %v1143
        %v1145 = vpop.f32.mrf.mxu0
        %v1146 = vadd.f32 %v778, %v1145
        %1147 = vmatmul.bf16.gmra.mxu0 %v709
        %v1148 = vpop.f32.mrf.mxu0
        %v1149 = vadd.f32 %v778, %v1148
        %v1150 = vpop.f32.mrf.mxu0
        %v1151 = vadd.f32 %v778, %v1150
        %1152 = vmatmul.bf16.gmra.mxu0 %v710
        %v1153 = vpop.f32.mrf.mxu0
        %v1154 = vadd.f32 %v778, %v1153
        %v1155 = vpop.f32.mrf.mxu0
        %v1156 = vadd.f32 %v778, %v1155
        %1157 = vmatmul.bf16.gmra.mxu0 %v711
        %v1158 = vpop.f32.mrf.mxu0
        %v1159 = vadd.f32 %v778, %v1158
        %v1160 = vpop.f32.mrf.mxu0
        %v1161 = vadd.f32 %v778, %v1160
        %1162 = vdwg.mxu0
        %1163 = vmatpush.bf16.msra.mxu0 %v1043
        %1164 = vmatpush.bf16.msra.mxu0 %v1035
        %1165 = vmatpush.bf16.msra.mxu0 %v1027
        %1166 = vmatpush.bf16.msra.mxu0 %v1019
        %1167 = vmatpush.bf16.msra.mxu0 %v1011
        %1168 = vmatpush.bf16.msra.mxu0 %v1003
        %1169 = vmatpush.bf16.msra.mxu0 %v995
        %1170 = vmatpush.bf16.msra.mxu0 %v987
        %1171 = vmatmul.bf16.gmra.mxu0 %v704
        %v1172 = vpop.f32.mrf.mxu0
        %v1173 = vadd.f32 %v779, %v1172
        %v1174 = vpop.f32.mrf.mxu0
        %v1175 = vadd.f32 %v779, %v1174
        %1176 = vmatmul.bf16.gmra.mxu0 %v705
        %v1177 = vpop.f32.mrf.mxu0
        %v1178 = vadd.f32 %v779, %v1177
        %v1179 = vpop.f32.mrf.mxu0
        %v1180 = vadd.f32 %v779, %v1179
        %1181 = vmatmul.bf16.gmra.mxu0 %v706
        %v1182 = vpop.f32.mrf.mxu0
        %v1183 = vadd.f32 %v779, %v1182
        %v1184 = vpop.f32.mrf.mxu0
        %v1185 = vadd.f32 %v779, %v1184
        %1186 = vmatmul.bf16.gmra.mxu0 %v707
        %v1187 = vpop.f32.mrf.mxu0
        %v1188 = vadd.f32 %v779, %v1187
        %v1189 = vpop.f32.mrf.mxu0
        %v1190 = vadd.f32 %v779, %v1189
        %1191 = vmatmul.bf16.gmra.mxu0 %v708
        %v1192 = vpop.f32.mrf.mxu0
        %v1193 = vadd.f32 %v779, %v1192
        %v1194 = vpop.f32.mrf.mxu0
        %v1195 = vadd.f32 %v779, %v1194
        %1196 = vmatmul.bf16.gmra.mxu0 %v709
        %v1197 = vpop.f32.mrf.mxu0
        %v1198 = vadd.f32 %v779, %v1197
        %v1199 = vpop.f32.mrf.mxu0
        %v1200 = vadd.f32 %v779, %v1199
        %1201 = vmatmul.bf16.gmra.mxu0 %v710
        %v1202 = vpop.f32.mrf.mxu0
        %v1203 = vadd.f32 %v779, %v1202
        %v1204 = vpop.f32.mrf.mxu0
        %v1205 = vadd.f32 %v779, %v1204
        %1206 = vmatmul.bf16.gmra.mxu0 %v711
        %v1207 = vpop.f32.mrf.mxu0
        %v1208 = vadd.f32 %v779, %v1207
        %v1209 = vpop.f32.mrf.mxu0
        %v1210 = vadd.f32 %v779, %v1209
        %1211 = vdwg.mxu0
        %1212 = vmatpush.bf16.msra.mxu0 %v1044
        %1213 = vmatpush.bf16.msra.mxu0 %v1036
        %1214 = vmatpush.bf16.msra.mxu0 %v1028
        %1215 = vmatpush.bf16.msra.mxu0 %v1020
        %1216 = vmatpush.bf16.msra.mxu0 %v1012
        %1217 = vmatpush.bf16.msra.mxu0 %v1004
        %1218 = vmatpush.bf16.msra.mxu0 %v996
        %1219 = vmatpush.bf16.msra.mxu0 %v988
        %1220 = vmatmul.bf16.gmra.mxu0 %v704
        %v1221 = vpop.f32.mrf.mxu0
        %v1222 = vadd.f32 %v780, %v1221
        %v1223 = vpop.f32.mrf.mxu0
        %v1224 = vadd.f32 %v780, %v1223
        %1225 = vmatmul.bf16.gmra.mxu0 %v705
        %v1226 = vpop.f32.mrf.mxu0
        %v1227 = vadd.f32 %v780, %v1226
        %v1228 = vpop.f32.mrf.mxu0
        %v1229 = vadd.f32 %v780, %v1228
        %1230 = vmatmul.bf16.gmra.mxu0 %v706
        %v1231 = vpop.f32.mrf.mxu0
        %v1232 = vadd.f32 %v780, %v1231
        %v1233 = vpop.f32.mrf.mxu0
        %v1234 = vadd.f32 %v780, %v1233
        %1235 = vmatmul.bf16.gmra.mxu0 %v707
        %v1236 = vpop.f32.mrf.mxu0
        %v1237 = vadd.f32 %v780, %v1236
        %v1238 = vpop.f32.mrf.mxu0
        %v1239 = vadd.f32 %v780, %v1238
        %1240 = vmatmul.bf16.gmra.mxu0 %v708
        %v1241 = vpop.f32.mrf.mxu0
        %v1242 = vadd.f32 %v780, %v1241
        %v1243 = vpop.f32.mrf.mxu0
        %v1244 = vadd.f32 %v780, %v1243
        %1245 = vmatmul.bf16.gmra.mxu0 %v709
        %v1246 = vpop.f32.mrf.mxu0
        %v1247 = vadd.f32 %v780, %v1246
        %v1248 = vpop.f32.mrf.mxu0
        %v1249 = vadd.f32 %v780, %v1248
        %1250 = vmatmul.bf16.gmra.mxu0 %v710
        %v1251 = vpop.f32.mrf.mxu0
        %v1252 = vadd.f32 %v780, %v1251
        %v1253 = vpop.f32.mrf.mxu0
        %v1254 = vadd.f32 %v780, %v1253
        %1255 = vmatmul.bf16.gmra.mxu0 %v711
        %v1256 = vpop.f32.mrf.mxu0
        %v1257 = vadd.f32 %v780, %v1256
        %v1258 = vpop.f32.mrf.mxu0
        %v1259 = vadd.f32 %v780, %v1258
        %1260 = vdwg.mxu0
        %1261 = vmatpush.bf16.msra.mxu0 %v1045
        %1262 = vmatpush.bf16.msra.mxu0 %v1037
        %1263 = vmatpush.bf16.msra.mxu0 %v1029
        %1264 = vmatpush.bf16.msra.mxu0 %v1021
        %1265 = vmatpush.bf16.msra.mxu0 %v1013
        %1266 = vmatpush.bf16.msra.mxu0 %v1005
        %1267 = vmatpush.bf16.msra.mxu0 %v997
        %1268 = vmatpush.bf16.msra.mxu0 %v989
        %1269 = vmatmul.bf16.gmra.mxu0 %v704
        %v1270 = vpop.f32.mrf.mxu0
        %v1271 = vadd.f32 %v781, %v1270
        %v1272 = vpop.f32.mrf.mxu0
        %v1273 = vadd.f32 %v781, %v1272
        %1274 = vmatmul.bf16.gmra.mxu0 %v705
        %v1275 = vpop.f32.mrf.mxu0
        %v1276 = vadd.f32 %v781, %v1275
        %v1277 = vpop.f32.mrf.mxu0
        %v1278 = vadd.f32 %v781, %v1277
        %1279 = vmatmul.bf16.gmra.mxu0 %v706
        %v1280 = vpop.f32.mrf.mxu0
        %v1281 = vadd.f32 %v781, %v1280
        %v1282 = vpop.f32.mrf.mxu0
        %v1283 = vadd.f32 %v781, %v1282
        %1284 = vmatmul.bf16.gmra.mxu0 %v707
        %v1285 = vpop.f32.mrf.mxu0
        %v1286 = vadd.f32 %v781, %v1285
        %v1287 = vpop.f32.mrf.mxu0
        %v1288 = vadd.f32 %v781, %v1287
        %1289 = vmatmul.bf16.gmra.mxu0 %v708
        %v1290 = vpop.f32.mrf.mxu0
        %v1291 = vadd.f32 %v781, %v1290
        %v1292 = vpop.f32.mrf.mxu0
        %v1293 = vadd.f32 %v781, %v1292
        %1294 = vmatmul.bf16.gmra.mxu0 %v709
        %v1295 = vpop.f32.mrf.mxu0
        %v1296 = vadd.f32 %v781, %v1295
        %v1297 = vpop.f32.mrf.mxu0
        %v1298 = vadd.f32 %v781, %v1297
        %1299 = vmatmul.bf16.gmra.mxu0 %v710
        %v1300 = vpop.f32.mrf.mxu0
        %v1301 = vadd.f32 %v781, %v1300
        %v1302 = vpop.f32.mrf.mxu0
        %v1303 = vadd.f32 %v781, %v1302
        %1304 = vmatmul.bf16.gmra.mxu0 %v711
        %v1305 = vpop.f32.mrf.mxu0
        %v1306 = vadd.f32 %v781, %v1305
        %v1307 = vpop.f32.mrf.mxu0
        %v1308 = vadd.f32 %v781, %v1307
        %1309 = vdwg.mxu0
        %1310 = vmatpush.bf16.msra.mxu0 %v1046
        %1311 = vmatpush.bf16.msra.mxu0 %v1038
        %1312 = vmatpush.bf16.msra.mxu0 %v1030
        %1313 = vmatpush.bf16.msra.mxu0 %v1022
        %1314 = vmatpush.bf16.msra.mxu0 %v1014
        %1315 = vmatpush.bf16.msra.mxu0 %v1006
        %1316 = vmatpush.bf16.msra.mxu0 %v998
        %1317 = vmatpush.bf16.msra.mxu0 %v990
        %1318 = vmatmul.bf16.gmra.mxu0 %v704
        %v1319 = vpop.f32.mrf.mxu0
        %v1320 = vadd.f32 %v782, %v1319
        %v1321 = vpop.f32.mrf.mxu0
        %v1322 = vadd.f32 %v782, %v1321
        %1323 = vmatmul.bf16.gmra.mxu0 %v705
        %v1324 = vpop.f32.mrf.mxu0
        %v1325 = vadd.f32 %v782, %v1324
        %v1326 = vpop.f32.mrf.mxu0
        %v1327 = vadd.f32 %v782, %v1326
        %1328 = vmatmul.bf16.gmra.mxu0 %v706
        %v1329 = vpop.f32.mrf.mxu0
        %v1330 = vadd.f32 %v782, %v1329
        %v1331 = vpop.f32.mrf.mxu0
        %v1332 = vadd.f32 %v782, %v1331
        %1333 = vmatmul.bf16.gmra.mxu0 %v707
        %v1334 = vpop.f32.mrf.mxu0
        %v1335 = vadd.f32 %v782, %v1334
        %v1336 = vpop.f32.mrf.mxu0
        %v1337 = vadd.f32 %v782, %v1336
        %1338 = vmatmul.bf16.gmra.mxu0 %v708
        %v1339 = vpop.f32.mrf.mxu0
        %v1340 = vadd.f32 %v782, %v1339
        %v1341 = vpop.f32.mrf.mxu0
        %v1342 = vadd.f32 %v782, %v1341
        %1343 = vmatmul.bf16.gmra.mxu0 %v709
        %v1344 = vpop.f32.mrf.mxu0
        %v1345 = vadd.f32 %v782, %v1344
        %v1346 = vpop.f32.mrf.mxu0
        %v1347 = vadd.f32 %v782, %v1346
        %1348 = vmatmul.bf16.gmra.mxu0 %v710
        %v1349 = vpop.f32.mrf.mxu0
        %v1350 = vadd.f32 %v782, %v1349
        %v1351 = vpop.f32.mrf.mxu0
        %v1352 = vadd.f32 %v782, %v1351
        %1353 = vmatmul.bf16.gmra.mxu0 %v711
        %v1354 = vpop.f32.mrf.mxu0
        %v1355 = vadd.f32 %v782, %v1354
        %v1356 = vpop.f32.mrf.mxu0
        %v1357 = vadd.f32 %v782, %v1356
        %1358 = vdwg.mxu0
        %1359 = vmatpush.bf16.msra.mxu0 %v1047
        %1360 = vmatpush.bf16.msra.mxu0 %v1039
        %1361 = vmatpush.bf16.msra.mxu0 %v1031
        %1362 = vmatpush.bf16.msra.mxu0 %v1023
        %1363 = vmatpush.bf16.msra.mxu0 %v1015
        %1364 = vmatpush.bf16.msra.mxu0 %v1007
        %1365 = vmatpush.bf16.msra.mxu0 %v999
        %1366 = vmatpush.bf16.msra.mxu0 %v991
        %1367 = vmatmul.bf16.gmra.mxu0 %v704
        %v1368 = vpop.f32.mrf.mxu0
        %v1369 = vadd.f32 %v783, %v1368
        %v1370 = vpop.f32.mrf.mxu0
        %v1371 = vadd.f32 %v783, %v1370
        %1372 = vmatmul.bf16.gmra.mxu0 %v705
        %v1373 = vpop.f32.mrf.mxu0
        %v1374 = vadd.f32 %v783, %v1373
        %v1375 = vpop.f32.mrf.mxu0
        %v1376 = vadd.f32 %v783, %v1375
        %1377 = vmatmul.bf16.gmra.mxu0 %v706
        %v1378 = vpop.f32.mrf.mxu0
        %v1379 = vadd.f32 %v783, %v1378
        %v1380 = vpop.f32.mrf.mxu0
        %v1381 = vadd.f32 %v783, %v1380
        %1382 = vmatmul.bf16.gmra.mxu0 %v707
        %v1383 = vpop.f32.mrf.mxu0
        %v1384 = vadd.f32 %v783, %v1383
        %v1385 = vpop.f32.mrf.mxu0
        %v1386 = vadd.f32 %v783, %v1385
        %1387 = vmatmul.bf16.gmra.mxu0 %v708
        %v1388 = vpop.f32.mrf.mxu0
        %v1389 = vadd.f32 %v783, %v1388
        %v1390 = vpop.f32.mrf.mxu0
        %v1391 = vadd.f32 %v783, %v1390
        %1392 = vmatmul.bf16.gmra.mxu0 %v709
        %v1393 = vpop.f32.mrf.mxu0
        %v1394 = vadd.f32 %v783, %v1393
        %v1395 = vpop.f32.mrf.mxu0
        %v1396 = vadd.f32 %v783, %v1395
        %1397 = vmatmul.bf16.gmra.mxu0 %v710
        %v1398 = vpop.f32.mrf.mxu0
        %v1399 = vadd.f32 %v783, %v1398
        %v1400 = vpop.f32.mrf.mxu0
        %v1401 = vadd.f32 %v783, %v1400
        %1402 = vmatmul.bf16.gmra.mxu0 %v711
        %v1403 = vpop.f32.mrf.mxu0
        %v1404 = vadd.f32 %v783, %v1403
        %v1405 = vpop.f32.mrf.mxu0
        %v1406 = vadd.f32 %v783, %v1405
        %1407 = vdwg.mxu0
        %1408 = vmatpush.bf16.msra.mxu0 %v1048
        %1409 = vmatpush.bf16.msra.mxu0 %v1040
        %1410 = vmatpush.bf16.msra.mxu0 %v1032
        %1411 = vmatpush.bf16.msra.mxu0 %v1024
        %1412 = vmatpush.bf16.msra.mxu0 %v1016
        %1413 = vmatpush.bf16.msra.mxu0 %v1008
        %1414 = vmatpush.bf16.msra.mxu0 %v1000
        %1415 = vmatpush.bf16.msra.mxu0 %v992
        %1416 = vmatmul.bf16.gmra.mxu0 %v704
        %v1417 = vpop.f32.mrf.mxu0
        %v1418 = vadd.f32 %v784, %v1417
        %v1419 = vpop.f32.mrf.mxu0
        %v1420 = vadd.f32 %v784, %v1419
        %1421 = vmatmul.bf16.gmra.mxu0 %v705
        %v1422 = vpop.f32.mrf.mxu0
        %v1423 = vadd.f32 %v784, %v1422
        %v1424 = vpop.f32.mrf.mxu0
        %v1425 = vadd.f32 %v784, %v1424
        %1426 = vmatmul.bf16.gmra.mxu0 %v706
        %v1427 = vpop.f32.mrf.mxu0
        %v1428 = vadd.f32 %v784, %v1427
        %v1429 = vpop.f32.mrf.mxu0
        %v1430 = vadd.f32 %v784, %v1429
        %1431 = vmatmul.bf16.gmra.mxu0 %v707
        %v1432 = vpop.f32.mrf.mxu0
        %v1433 = vadd.f32 %v784, %v1432
        %v1434 = vpop.f32.mrf.mxu0
        %v1435 = vadd.f32 %v784, %v1434
        %1436 = vmatmul.bf16.gmra.mxu0 %v708
        %v1437 = vpop.f32.mrf.mxu0
        %v1438 = vadd.f32 %v784, %v1437
        %v1439 = vpop.f32.mrf.mxu0
        %v1440 = vadd.f32 %v784, %v1439
        %1441 = vmatmul.bf16.gmra.mxu0 %v709
        %v1442 = vpop.f32.mrf.mxu0
        %v1443 = vadd.f32 %v784, %v1442
        %v1444 = vpop.f32.mrf.mxu0
        %v1445 = vadd.f32 %v784, %v1444
        %1446 = vmatmul.bf16.gmra.mxu0 %v710
        %v1447 = vpop.f32.mrf.mxu0
        %v1448 = vadd.f32 %v784, %v1447
        %v1449 = vpop.f32.mrf.mxu0
        %v1450 = vadd.f32 %v784, %v1449
        %1451 = vmatmul.bf16.gmra.mxu0 %v711
        %v1452 = vpop.f32.mrf.mxu0
        %v1453 = vadd.f32 %v784, %v1452
        %v1454 = vpop.f32.mrf.mxu0
        %v1455 = vadd.f32 %v784, %v1454
        %1456 = vdwg.mxu0
        %1457 = vmatpush.bf16.msra.mxu0 %v1049
        %1458 = vmatpush.bf16.msra.mxu0 %v1041
        %1459 = vmatpush.bf16.msra.mxu0 %v1033
        %1460 = vmatpush.bf16.msra.mxu0 %v1025
        %1461 = vmatpush.bf16.msra.mxu0 %v1017
        %1462 = vmatpush.bf16.msra.mxu0 %v1009
        %1463 = vmatpush.bf16.msra.mxu0 %v1001
        %1464 = vmatpush.bf16.msra.mxu0 %v993
        %1465 = vmatmul.bf16.gmra.mxu0 %v704
        %v1466 = vpop.f32.mrf.mxu0
        %v1467 = vadd.f32 %v785, %v1466
        %v1468 = vpop.f32.mrf.mxu0
        %v1469 = vadd.f32 %v785, %v1468
        %1470 = vmatmul.bf16.gmra.mxu0 %v705
        %v1471 = vpop.f32.mrf.mxu0
        %v1472 = vadd.f32 %v785, %v1471
        %v1473 = vpop.f32.mrf.mxu0
        %v1474 = vadd.f32 %v785, %v1473
        %1475 = vmatmul.bf16.gmra.mxu0 %v706
        %v1476 = vpop.f32.mrf.mxu0
        %v1477 = vadd.f32 %v785, %v1476
        %v1478 = vpop.f32.mrf.mxu0
        %v1479 = vadd.f32 %v785, %v1478
        %1480 = vmatmul.bf16.gmra.mxu0 %v707
        %v1481 = vpop.f32.mrf.mxu0
        %v1482 = vadd.f32 %v785, %v1481
        %v1483 = vpop.f32.mrf.mxu0
        %v1484 = vadd.f32 %v785, %v1483
        %1485 = vmatmul.bf16.gmra.mxu0 %v708
        %v1486 = vpop.f32.mrf.mxu0
        %v1487 = vadd.f32 %v785, %v1486
        %v1488 = vpop.f32.mrf.mxu0
        %v1489 = vadd.f32 %v785, %v1488
        %1490 = vmatmul.bf16.gmra.mxu0 %v709
        %v1491 = vpop.f32.mrf.mxu0
        %v1492 = vadd.f32 %v785, %v1491
        %v1493 = vpop.f32.mrf.mxu0
        %v1494 = vadd.f32 %v785, %v1493
        %1495 = vmatmul.bf16.gmra.mxu0 %v710
        %v1496 = vpop.f32.mrf.mxu0
        %v1497 = vadd.f32 %v785, %v1496
        %v1498 = vpop.f32.mrf.mxu0
        %v1499 = vadd.f32 %v785, %v1498
        %1500 = vmatmul.bf16.gmra.mxu0 %v711
        %v1501 = vpop.f32.mrf.mxu0
        %v1502 = vadd.f32 %v785, %v1501
        %v1503 = vpop.f32.mrf.mxu0
        %v1504 = vadd.f32 %v785, %v1503
        %1505 = vdwg.mxu0
        %v1506 = vmax.f32 %v1124, 0.0
        %v1507 = vmax.f32 %v1173, 0.0
        %v1508 = vmax.f32 %v1222, 0.0
        %v1509 = vmax.f32 %v1271, 0.0
        %v1510 = vmax.f32 %v1320, 0.0
        %v1511 = vmax.f32 %v1369, 0.0
        %v1512 = vmax.f32 %v1418, 0.0
        %v1513 = vmax.f32 %v1467, 0.0
        %v1514 = vmax.f32 %v1126, 0.0
        %v1515 = vmax.f32 %v1175, 0.0
        %v1516 = vmax.f32 %v1224, 0.0
        %v1517 = vmax.f32 %v1273, 0.0
        %v1518 = vmax.f32 %v1322, 0.0
        %v1519 = vmax.f32 %v1371, 0.0
        %v1520 = vmax.f32 %v1420, 0.0
        %v1521 = vmax.f32 %v1469, 0.0
        %v1522 = vmax.f32 %v1129, 0.0
        %v1523 = vmax.f32 %v1178, 0.0
        %v1524 = vmax.f32 %v1227, 0.0
        %v1525 = vmax.f32 %v1276, 0.0
        %v1526 = vmax.f32 %v1325, 0.0
        %v1527 = vmax.f32 %v1374, 0.0
        %v1528 = vmax.f32 %v1423, 0.0
        %v1529 = vmax.f32 %v1472, 0.0
        %v1530 = vmax.f32 %v1131, 0.0
        %v1531 = vmax.f32 %v1180, 0.0
        %v1532 = vmax.f32 %v1229, 0.0
        %v1533 = vmax.f32 %v1278, 0.0
        %v1534 = vmax.f32 %v1327, 0.0
        %v1535 = vmax.f32 %v1376, 0.0
        %v1536 = vmax.f32 %v1425, 0.0
        %v1537 = vmax.f32 %v1474, 0.0
        %v1538 = vmax.f32 %v1134, 0.0
        %v1539 = vmax.f32 %v1183, 0.0
        %v1540 = vmax.f32 %v1232, 0.0
        %v1541 = vmax.f32 %v1281, 0.0
        %v1542 = vmax.f32 %v1330, 0.0
        %v1543 = vmax.f32 %v1379, 0.0
        %v1544 = vmax.f32 %v1428, 0.0
        %v1545 = vmax.f32 %v1477, 0.0
        %v1546 = vmax.f32 %v1136, 0.0
        %v1547 = vmax.f32 %v1185, 0.0
        %v1548 = vmax.f32 %v1234, 0.0
        %v1549 = vmax.f32 %v1283, 0.0
        %v1550 = vmax.f32 %v1332, 0.0
        %v1551 = vmax.f32 %v1381, 0.0
        %v1552 = vmax.f32 %v1430, 0.0
        %v1553 = vmax.f32 %v1479, 0.0
        %v1554 = vmax.f32 %v1139, 0.0
        %v1555 = vmax.f32 %v1188, 0.0
        %v1556 = vmax.f32 %v1237, 0.0
        %v1557 = vmax.f32 %v1286, 0.0
        %v1558 = vmax.f32 %v1335, 0.0
        %v1559 = vmax.f32 %v1384, 0.0
        %v1560 = vmax.f32 %v1433, 0.0
        %v1561 = vmax.f32 %v1482, 0.0
        %v1562 = vmax.f32 %v1141, 0.0
        %v1563 = vmax.f32 %v1190, 0.0
        %v1564 = vmax.f32 %v1239, 0.0
        %v1565 = vmax.f32 %v1288, 0.0
        %v1566 = vmax.f32 %v1337, 0.0
        %v1567 = vmax.f32 %v1386, 0.0
        %v1568 = vmax.f32 %v1435, 0.0
        %v1569 = vmax.f32 %v1484, 0.0
        %v1570 = vmax.f32 %v1144, 0.0
        %v1571 = vmax.f32 %v1193, 0.0
        %v1572 = vmax.f32 %v1242, 0.0
        %v1573 = vmax.f32 %v1291, 0.0
        %v1574 = vmax.f32 %v1340, 0.0
        %v1575 = vmax.f32 %v1389, 0.0
        %v1576 = vmax.f32 %v1438, 0.0
        %v1577 = vmax.f32 %v1487, 0.0
        %v1578 = vmax.f32 %v1146, 0.0
        %v1579 = vmax.f32 %v1195, 0.0
        %v1580 = vmax.f32 %v1244, 0.0
        %v1581 = vmax.f32 %v1293, 0.0
        %v1582 = vmax.f32 %v1342, 0.0
        %v1583 = vmax.f32 %v1391, 0.0
        %v1584 = vmax.f32 %v1440, 0.0
        %v1585 = vmax.f32 %v1489, 0.0
        %v1586 = vmax.f32 %v1149, 0.0
        %v1587 = vmax.f32 %v1198, 0.0
        %v1588 = vmax.f32 %v1247, 0.0
        %v1589 = vmax.f32 %v1296, 0.0
        %v1590 = vmax.f32 %v1345, 0.0
        %v1591 = vmax.f32 %v1394, 0.0
        %v1592 = vmax.f32 %v1443, 0.0
        %v1593 = vmax.f32 %v1492, 0.0
        %v1594 = vmax.f32 %v1151, 0.0
        %v1595 = vmax.f32 %v1200, 0.0
        %v1596 = vmax.f32 %v1249, 0.0
        %v1597 = vmax.f32 %v1298, 0.0
        %v1598 = vmax.f32 %v1347, 0.0
        %v1599 = vmax.f32 %v1396, 0.0
        %v1600 = vmax.f32 %v1445, 0.0
        %v1601 = vmax.f32 %v1494, 0.0
        %v1602 = vmax.f32 %v1154, 0.0
        %v1603 = vmax.f32 %v1203, 0.0
        %v1604 = vmax.f32 %v1252, 0.0
        %v1605 = vmax.f32 %v1301, 0.0
        %v1606 = vmax.f32 %v1350, 0.0
        %v1607 = vmax.f32 %v1399, 0.0
        %v1608 = vmax.f32 %v1448, 0.0
        %v1609 = vmax.f32 %v1497, 0.0
        %v1610 = vmax.f32 %v1156, 0.0
        %v1611 = vmax.f32 %v1205, 0.0
        %v1612 = vmax.f32 %v1254, 0.0
        %v1613 = vmax.f32 %v1303, 0.0
        %v1614 = vmax.f32 %v1352, 0.0
        %v1615 = vmax.f32 %v1401, 0.0
        %v1616 = vmax.f32 %v1450, 0.0
        %v1617 = vmax.f32 %v1499, 0.0
        %v1618 = vmax.f32 %v1159, 0.0
        %v1619 = vmax.f32 %v1208, 0.0
        %v1620 = vmax.f32 %v1257, 0.0
        %v1621 = vmax.f32 %v1306, 0.0
        %v1622 = vmax.f32 %v1355, 0.0
        %v1623 = vmax.f32 %v1404, 0.0
        %v1624 = vmax.f32 %v1453, 0.0
        %v1625 = vmax.f32 %v1502, 0.0
        %v1626 = vmax.f32 %v1161, 0.0
        %v1627 = vmax.f32 %v1210, 0.0
        %v1628 = vmax.f32 %v1259, 0.0
        %v1629 = vmax.f32 %v1308, 0.0
        %v1630 = vmax.f32 %v1357, 0.0
        %v1631 = vmax.f32 %v1406, 0.0
        %v1632 = vmax.f32 %v1455, 0.0
        %v1633 = vmax.f32 %v1504, 0.0
        %v1634 = vmax.f32 %v1506, %v1514
        %v1635 = vmax.f32 %v1634, %v1522
        %v1636 = vmax.f32 %v1635, %v1530
        %v1637 = vmax.f32 %v1636, %v1538
        %v1638 = vmax.f32 %v1637, %v1546
        %v1639 = vmax.f32 %v1638, %v1554
        %v1640 = vmax.f32 %v1639, %v1562
        %v1641 = vmax.f32 %v1640, %v1570
        %v1642 = vmax.f32 %v1641, %v1578
        %v1643 = vmax.f32 %v1642, %v1586
        %v1644 = vmax.f32 %v1643, %v1594
        %v1645 = vmax.f32 %v1644, %v1602
        %v1646 = vmax.f32 %v1645, %v1610
        %v1647 = vmax.f32 %v1646, %v1618
        %v1648 = vmax.f32 %v1647, %v1626
        %v1649 = vrot.slane %v1648, 4
        %v1650 = vmax.f32 %v1648, %v1649
        %v1651 = vrot.slane %v1650, 2
        %v1652 = vmax.f32 %v1650, %v1651
        %v1653 = vrot.slane %v1652, 1
        %v1654 = vmax.f32 %v1652, %v1653
        %v1655 = vmax.f32 %v1507, %v1515
        %v1656 = vmax.f32 %v1655, %v1523
        %v1657 = vmax.f32 %v1656, %v1531
        %v1658 = vmax.f32 %v1657, %v1539
        %v1659 = vmax.f32 %v1658, %v1547
        %v1660 = vmax.f32 %v1659, %v1555
        %v1661 = vmax.f32 %v1660, %v1563
        %v1662 = vmax.f32 %v1661, %v1571
        %v1663 = vmax.f32 %v1662, %v1579
        %v1664 = vmax.f32 %v1663, %v1587
        %v1665 = vmax.f32 %v1664, %v1595
        %v1666 = vmax.f32 %v1665, %v1603
        %v1667 = vmax.f32 %v1666, %v1611
        %v1668 = vmax.f32 %v1667, %v1619
        %v1669 = vmax.f32 %v1668, %v1627
        %v1670 = vrot.slane %v1669, 4
        %v1671 = vmax.f32 %v1669, %v1670
        %v1672 = vrot.slane %v1671, 2
        %v1673 = vmax.f32 %v1671, %v1672
        %v1674 = vrot.slane %v1673, 1
        %v1675 = vmax.f32 %v1673, %v1674
        %v1676 = vmax.f32 %v1508, %v1516
        %v1677 = vmax.f32 %v1676, %v1524
        %v1678 = vmax.f32 %v1677, %v1532
        %v1679 = vmax.f32 %v1678, %v1540
        %v1680 = vmax.f32 %v1679, %v1548
        %v1681 = vmax.f32 %v1680, %v1556
        %v1682 = vmax.f32 %v1681, %v1564
        %v1683 = vmax.f32 %v1682, %v1572
        %v1684 = vmax.f32 %v1683, %v1580
        %v1685 = vmax.f32 %v1684, %v1588
        %v1686 = vmax.f32 %v1685, %v1596
        %v1687 = vmax.f32 %v1686, %v1604
        %v1688 = vmax.f32 %v1687, %v1612
        %v1689 = vmax.f32 %v1688, %v1620
        %v1690 = vmax.f32 %v1689, %v1628
        %v1691 = vrot.slane %v1690, 4
        %v1692 = vmax.f32 %v1690, %v1691
        %v1693 = vrot.slane %v1692, 2
        %v1694 = vmax.f32 %v1692, %v1693
        %v1695 = vrot.slane %v1694, 1
        %v1696 = vmax.f32 %v1694, %v1695
        %v1697 = vmax.f32 %v1509, %v1517
        %v1698 = vmax.f32 %v1697, %v1525
        %v1699 = vmax.f32 %v1698, %v1533
        %v1700 = vmax.f32 %v1699, %v1541
        %v1701 = vmax.f32 %v1700, %v1549
        %v1702 = vmax.f32 %v1701, %v1557
        %v1703 = vmax.f32 %v1702, %v1565
        %v1704 = vmax.f32 %v1703, %v1573
        %v1705 = vmax.f32 %v1704, %v1581
        %v1706 = vmax.f32 %v1705, %v1589
        %v1707 = vmax.f32 %v1706, %v1597
        %v1708 = vmax.f32 %v1707, %v1605
        %v1709 = vmax.f32 %v1708, %v1613
        %v1710 = vmax.f32 %v1709, %v1621
        %v1711 = vmax.f32 %v1710, %v1629
        %v1712 = vrot.slane %v1711, 4
        %v1713 = vmax.f32 %v1711, %v1712
        %v1714 = vrot.slane %v1713, 2
        %v1715 = vmax.f32 %v1713, %v1714
        %v1716 = vrot.slane %v1715, 1
        %v1717 = vmax.f32 %v1715, %v1716
        %v1718 = vmax.f32 %v1510, %v1518
        %v1719 = vmax.f32 %v1718, %v1526
        %v1720 = vmax.f32 %v1719, %v1534
        %v1721 = vmax.f32 %v1720, %v1542
        %v1722 = vmax.f32 %v1721, %v1550
        %v1723 = vmax.f32 %v1722, %v1558
        %v1724 = vmax.f32 %v1723, %v1566
        %v1725 = vmax.f32 %v1724, %v1574
        %v1726 = vmax.f32 %v1725, %v1582
        %v1727 = vmax.f32 %v1726, %v1590
        %v1728 = vmax.f32 %v1727, %v1598
        %v1729 = vmax.f32 %v1728, %v1606
        %v1730 = vmax.f32 %v1729, %v1614
        %v1731 = vmax.f32 %v1730, %v1622
        %v1732 = vmax.f32 %v1731, %v1630
        %v1733 = vrot.slane %v1732, 4
        %v1734 = vmax.f32 %v1732, %v1733
        %v1735 = vrot.slane %v1734, 2
        %v1736 = vmax.f32 %v1734, %v1735
        %v1737 = vrot.slane %v1736, 1
        %v1738 = vmax.f32 %v1736, %v1737
        %v1739 = vmax.f32 %v1511, %v1519
        %v1740 = vmax.f32 %v1739, %v1527
        %v1741 = vmax.f32 %v1740, %v1535
        %v1742 = vmax.f32 %v1741, %v1543
        %v1743 = vmax.f32 %v1742, %v1551
        %v1744 = vmax.f32 %v1743, %v1559
        %v1745 = vmax.f32 %v1744, %v1567
        %v1746 = vmax.f32 %v1745, %v1575
        %v1747 = vmax.f32 %v1746, %v1583
        %v1748 = vmax.f32 %v1747, %v1591
        %v1749 = vmax.f32 %v1748, %v1599
        %v1750 = vmax.f32 %v1749, %v1607
        %v1751 = vmax.f32 %v1750, %v1615
        %v1752 = vmax.f32 %v1751, %v1623
        %v1753 = vmax.f32 %v1752, %v1631
        %v1754 = vrot.slane %v1753, 4
        %v1755 = vmax.f32 %v1753, %v1754
        %v1756 = vrot.slane %v1755, 2
        %v1757 = vmax.f32 %v1755, %v1756
        %v1758 = vrot.slane %v1757, 1
        %v1759 = vmax.f32 %v1757, %v1758
        %v1760 = vmax.f32 %v1512, %v1520
        %v1761 = vmax.f32 %v1760, %v1528
        %v1762 = vmax.f32 %v1761, %v1536
        %v1763 = vmax.f32 %v1762, %v1544
        %v1764 = vmax.f32 %v1763, %v1552
        %v1765 = vmax.f32 %v1764, %v1560
        %v1766 = vmax.f32 %v1765, %v1568
        %v1767 = vmax.f32 %v1766, %v1576
        %v1768 = vmax.f32 %v1767, %v1584
        %v1769 = vmax.f32 %v1768, %v1592
        %v1770 = vmax.f32 %v1769, %v1600
        %v1771 = vmax.f32 %v1770, %v1608
        %v1772 = vmax.f32 %v1771, %v1616
        %v1773 = vmax.f32 %v1772, %v1624
        %v1774 = vmax.f32 %v1773, %v1632
        %v1775 = vrot.slane %v1774, 4
        %v1776 = vmax.f32 %v1774, %v1775
        %v1777 = vrot.slane %v1776, 2
        %v1778 = vmax.f32 %v1776, %v1777
        %v1779 = vrot.slane %v1778, 1
        %v1780 = vmax.f32 %v1778, %v1779
        %v1781 = vmax.f32 %v1513, %v1521
        %v1782 = vmax.f32 %v1781, %v1529
        %v1783 = vmax.f32 %v1782, %v1537
        %v1784 = vmax.f32 %v1783, %v1545
        %v1785 = vmax.f32 %v1784, %v1553
        %v1786 = vmax.f32 %v1785, %v1561
        %v1787 = vmax.f32 %v1786, %v1569
        %v1788 = vmax.f32 %v1787, %v1577
        %v1789 = vmax.f32 %v1788, %v1585
        %v1790 = vmax.f32 %v1789, %v1593
        %v1791 = vmax.f32 %v1790, %v1601
        %v1792 = vmax.f32 %v1791, %v1609
        %v1793 = vmax.f32 %v1792, %v1617
        %v1794 = vmax.f32 %v1793, %v1625
        %v1795 = vmax.f32 %v1794, %v1633
        %v1796 = vrot.slane %v1795, 4
        %v1797 = vmax.f32 %v1795, %v1796
        %v1798 = vrot.slane %v1797, 2
        %v1799 = vmax.f32 %v1797, %v1798
        %v1800 = vrot.slane %v1799, 1
        %v1801 = vmax.f32 %v1799, %v1800
        %p1802 = scmp.eq.s32.totalorder %s27, 0
        // Predicated region
        $region53: #{tpu_custom_call.1} parent=47 // pred_check
          %p1803 = pneg %p1802
        $region54: #{tpu_custom_call.1} parent=47 // pred_check_branch
          %1805 = sbr.rel (%p1803) target = $region56
        $region55: #{tpu_custom_call.1} parent=47 // pred_region
          %v1814 = vrot.slane %v1675, 7
          %v1815 = vrot.slane %v1696, 6
          %v1816 = vrot.slane %v1717, 5
          %v1817 = vrot.slane %v1738, 4
          %v1818 = vrot.slane %v1759, 3
          %v1819 = vrot.slane %v1780, 2
          %v1820 = vrot.slane %v1801, 1
          %vm1821 = vcmask 1040384
          %v1822 = vsel %vm1821, %v1654, %v1814
          %vm1823 = vcmask 1042434
          %v1824 = vsel %vm1823, %v1815, %v1816
          %vm1825 = vcmask 1041408
          %v1826 = vsel %vm1825, %v1822, %v1824
          %vm1827 = vcmask 1044484
          %v1828 = vsel %vm1827, %v1817, %v1818
          %vm1829 = vcmask 1046534
          %v1830 = vsel %vm1829, %v1819, %v1820
          %vm1831 = vcmask 1045508
          %v1832 = vsel %vm1831, %v1828, %v1830
          %vm1833 = vcmask 1043456
          %v1834 = vsel %vm1833, %v1826, %v1832
          %1836 = vst [vmem:[%s308] sm:$0xff] %v1834
        $region56: #{tpu_custom_call.1} parent=47 // pred_fallthru
          _
        %p1837 = scmp.gt.s32.totalorder %s27, 0
        // Predicated region
        $region57: #{tpu_custom_call.1} parent=47 // pred_check
          %p1838 = pneg %p1837
        $region58: #{tpu_custom_call.1} parent=47 // pred_check_branch
          %1840 = sbr.rel (%p1838) target = $region60
        $region59: #{tpu_custom_call.1} parent=47 // pred_region
          %v1841 = vld [vmem:[%s308] sm:$0xff]
          %v1850 = vrot.slane %v1675, 7
          %v1851 = vrot.slane %v1696, 6
          %v1852 = vrot.slane %v1717, 5
          %v1853 = vrot.slane %v1738, 4
          %v1854 = vrot.slane %v1759, 3
          %v1855 = vrot.slane %v1780, 2
          %v1856 = vrot.slane %v1801, 1
          %vm1857 = vcmask 1040384
          %v1858 = vsel %vm1857, %v1654, %v1850
          %vm1859 = vcmask 1042434
          %v1860 = vsel %vm1859, %v1851, %v1852
          %vm1861 = vcmask 1041408
          %v1862 = vsel %vm1861, %v1858, %v1860
          %vm1863 = vcmask 1044484
          %v1864 = vsel %vm1863, %v1853, %v1854
          %vm1865 = vcmask 1046534
          %v1866 = vsel %vm1865, %v1855, %v1856
          %vm1867 = vcmask 1045508
          %v1868 = vsel %vm1867, %v1864, %v1866
          %vm1869 = vcmask 1043456
          %v1870 = vsel %vm1869, %v1862, %v1868
          %v1872 = vmax.f32 %v1841, %v1870
          %1873 = vst [vmem:[%s308] sm:$0xff] %v1872
        $region60: #{tpu_custom_call.1} parent=47 // pred_fallthru
          _
        %s1874 = sand.u32 %s196, 1
        %s1875 = scalar_lea.sflag [#allocation4], %s1874
        %s1876 = sand.u32 %s196, 1
        %s1877 = smul.addr %s1876, 8
        %s1878 = scalar_lea.vmem [#allocation5], %s1877
        // Predicated region
        $region61: #{tpu_custom_call.1} parent=47 // pred_check
          %p1879 = pneg %p206
        $region62: #{tpu_custom_call.1} parent=47 // pred_check_branch
          %1881 = sbr.rel (%p1879) target = $region64
        $region63: #{tpu_custom_call.1} parent=47 // pred_region
          %1883 = vsyncadd %s1875, 0
          %s1884 = smul.addr %s26, 8
          %s1885 = scalar_lea.hbm %s7, %s1884
          %s1887 = sshll.u32 %s1878, 4
          %s1888 = int_to_ptr.vmem [resolvable:$true] %s1887
          %s1889 = sshll.u32 %s1885, 4
          %s1890 = int_to_ptr.hbm [resolvable:$true] %s1889
          %1892 = dma.vmem_to_hbm [thread:$0]  %s1888, 128, %s1890, %s1875
        $region64: #{tpu_custom_call.1} parent=47 // pred_fallthru
          _
      $region48: #{tpu_custom_call.1} parent=5 // pred_fallthru
        _
      %p1893 = scmp.le.s32.totalorder 2, %s17
      // Predicated region
      $region65: #{tpu_custom_call.1} parent=5 // pred_check
        %p1894 = pneg %p1893
      $region66: #{tpu_custom_call.1} parent=5 // pred_check_branch
        %1896 = sbr.rel (%p1894) target = $region68
      $region67: #{tpu_custom_call.1} parent=5 // pred_region
        %s1897 = ssub.s32 %s17, 2
        // Predicated region
        $region69: #{tpu_custom_call.1} parent=67 // pred_check
          %p1898 = pneg %p212
        $region70: #{tpu_custom_call.1} parent=67 // pred_check_branch
          %1900 = sbr.rel (%p1898) target = $region72
        $region71: #{tpu_custom_call.1} parent=67 // pred_region
          %s1901 = sand.u32 %s197, 1
          %s1902 = scalar_lea.sflag [#allocation4], %s1901
          %s1903 = sand.u32 %s197, 1
          %s1904 = smul.addr %s1903, 8
          %s1905 = scalar_lea.vmem [#allocation5], %s1904
          %1907 = dma.done %s1902, 128
        $region72: #{tpu_custom_call.1} parent=67 // pred_fallthru
          _
      $region68: #{tpu_custom_call.1} parent=5 // pred_fallthru
        _
    $region6: #{tpu_custom_call.1} parent=1 // loop_footer
      %s21 = sadd.s32 1, %s17
    $region7: #{tpu_custom_call.1} parent=1 // loop_footer_branch
      %16 = sbr.rel target = $region3
    $region8: #{tpu_custom_call.1} parent=1 // loop_exit
      _
    %1908 = vsyncpa [#allocation3], 1
    %s1909 = scalar_lea.sflag [#allocation3], 1
    %1910 = vsyncpa %s1909, 1
    %1911 = vsyncpa [#allocation4], 1
    %s1912 = scalar_lea.sflag [#allocation4], 1
    %1913 = vsyncpa %s1912, 1

</llo_original>
